<compile_context>
chip_gen: v6e
topology: v6e:2x2x1
jax: 0.10.0
libtpu: 0.0.40
codegen_flags: <defaults>
</compile_context>

<pallas_src>
import jax
import jax.numpy as jnp
import numpy as np
from jax.experimental import pallas as pl
from jax.experimental.pallas import tpu as pltpu

B = 2          # batch
N = 16         # number of points (keep a multiple of 8 for a free reshape)
CIN = 3        # input_dim
ZDIM = 128     # zdim
EPS = 1e-5

# Channel widths of the layers.
C1, C2, C3, C4 = 128, 128, 256, 512
F1, F2, F3 = 256, 128, ZDIM

# --- bias packing: one (1, BTOT) f32 array; every offset is a multiple of 128
_BIAS_ORDER = [("b1", C1), ("b2", C2), ("b3", C3), ("b4", C4),
               ("f1", F1), ("f2", F2), ("f3", F3)]
BOFF = {}
_off = 0
for _name, _w in _BIAS_ORDER:
    BOFF[_name] = _off
    _off += _w
BTOT = _off                      # 1536

# --- packed weight lane offsets
# wA (128 rows): [w2 (128) | w3 (256) | wf3 (128)]  -> lane width 512
WA_W2, WA_W3, WA_WF3 = 0, C2, C2 + C3
# wB (256 rows): [w4 (512) | wf2 (128)]             -> lane width 640
WB_W4, WB_WF2 = 0, C4


# ---------------------------------------------------------------------------
# Kernel: whole forward pass in one invocation (everything fits in VMEM).
# ---------------------------------------------------------------------------
def encoder_kernel(x_ref, b_ref, w1_ref, wa_ref, wb_ref, wc_ref, out_ref):
    bf16 = jnp.bfloat16
    f32 = jnp.float32

    def bias(name, width):
        off = BOFF[name]
        return b_ref[:, off:off + width]          # (1, width) f32, lane-aligned

    def mm(a, w, b):
        # bf16 x bf16 matmul with f32 accumulation, f32 bias add.
        return jnp.dot(a, w, preferred_element_type=f32) + b

    x = x_ref[...]                                # (B*N, CIN) f32

    # ---- Layer 1 (conv1 + bn1 + ReLU).  K = CIN = 3, so do it on the VPU as
    #      CIN broadcast multiply-adds instead of a tiny-K MXU matmul.
    h = bias("b1", C1)                            # (1, 128) f32
    for i in range(CIN):
        h = h + x[:, i:i + 1] * w1_ref[i:i + 1, :]
    h = jnp.maximum(h, 0.0).astype(bf16)          # (B*N, 128)

    # ---- Layers 2..4 (point-wise, BN folded).  MXU, f32 accumulation.
    h = jnp.maximum(mm(h, wa_ref[:, WA_W2:WA_W2 + C2], bias("b2", C2)),
                    0.0).astype(bf16)             # (B*N, 128)
    h = jnp.maximum(mm(h, wa_ref[:, WA_W3:WA_W3 + C3], bias("b3", C3)),
                    0.0).astype(bf16)             # (B*N, 256)
    h = mm(h, wb_ref[:, WB_W4:WB_W4 + C4], bias("b4", C4))       # (B*N, 512) f32

    # ---- Global max-pool over the point axis (torch.max(x, 2)), per batch.
    #      N is a multiple of 8 so the reshape stays sublane-aligned (cheap).
    g = jnp.max(h.reshape(B, N, C4), axis=1)      # (B, 512) f32

    # ---- FC head (fc1/fc2 with folded BN + ReLU, fc3 plain).
    m = jnp.maximum(mm(g.astype(bf16), wc_ref[...], bias("f1", F1)),
                    0.0).astype(bf16)             # (B, 256)
    m = jnp.maximum(mm(m, wb_ref[:, WB_WF2:WB_WF2 + F2], bias("f2", F2)),
                    0.0).astype(bf16)             # (B, 128)
    z = mm(m, wa_ref[:, WA_WF3:WA_WF3 + F3], bias("f3", F3))     # (B, ZDIM) f32

    out_ref[...] = z.astype(out_ref.dtype)        # lane-dense (B, 128) store


# ---------------------------------------------------------------------------
# Parameter preparation (done ONCE, outside the per-call path).
# ---------------------------------------------------------------------------
def fold_bn(w, bias, gamma, beta, mean, var, eps=EPS):
    """Fold eval-mode BatchNorm into a linear layer: y = (x@w + bias - m)*s + t."""
    s = gamma / jnp.sqrt(var + eps)
    w_eff = w * s[None, :]
    b_eff = (bias - mean) * s + beta
    return w_eff, b_eff


def prepare_params(P):
    """Fold BN, pack biases into one lane-aligned array, pack bf16 weights."""
    w1, b1 = fold_bn(P["wc1"], P["bc1"], P["g1"], P["be1"], P["m1"], P["v1"])
    w2, b2 = fold_bn(P["wc2"], P["bc2"], P["g2"], P["be2"], P["m2"], P["v2"])
    w3, b3 = fold_bn(P["wc3"], P["bc3"], P["g3"], P["be3"], P["m3"], P["v3"])
    w4, b4 = fold_bn(P["wc4"], P["bc4"], P["g4"], P["be4"], P["m4"], P["v4"])
    wf1, bf1 = fold_bn(P["wf1"], P["bf1"], P["fg1"], P["fbe1"], P["fm1"], P["fv1"])
    wf2, bf2 = fold_bn(P["wf2"], P["bf2"], P["fg2"], P["fbe2"], P["fm2"], P["fv2"])
    wf3, bf3 = P["wf3"], P["bf3"]

    bf16 = jnp.bfloat16

    # All 7 biases in one (1, 1536) f32 array (all slice offsets % 128 == 0).
    b_all = jnp.concatenate([b1, b2, b3, b4, bf1, bf2, bf3]).reshape(1, BTOT)
    b_all = b_all.astype(jnp.float32)

    # Layer-1 weight stays f32 (used on the VPU, K = 3).
    w1 = w1.astype(jnp.float32)                                  # (CIN, 128)

    # Packed bf16 weights, grouped by sublane count so lane slices are aligned.
    wA = jnp.concatenate([w2, w3, wf3], axis=1).astype(bf16)     # (128, 512)
    wB = jnp.concatenate([w4, wf2], axis=1).astype(bf16)         # (256, 640)
    wC = wf1.astype(bf16)                                        # (512, 256)

    folded = (b_all, w1, wA, wB, wC)
    return jax.tree_util.tree_map(jax.device_put, folded)


# ---------------------------------------------------------------------------
# Wrapper
# ---------------------------------------------------------------------------
def _cost_estimate():
    flops = 2 * B * N * (CIN * C1 + C1 * C2 + C2 * C3 + C3 * C4)
    flops += 2 * B * (C4 * F1 + F1 * F2 + F2 * F3)
    bytes_accessed = (B * N * CIN * 4 + BTOT * 4 + CIN * C1 * 4
                      + (128 * 512 + 256 * 640 + 512 * 256) * 2
                      + B * ZDIM * 4)
    return pl.CostEstimate(flops=int(flops), transcendentals=0,
                           bytes_accessed=int(bytes_accessed))


@jax.jit
def encoder_forward(x, folded):
    b_all, w1, wA, wB, wC = folded
    # Free metadata reshape; the f32 -> bf16 cast happens inside the kernel,
    # so there is no extra XLA op / HBM round trip in front of the call.
    xf = x.reshape(B * N, CIN)

    vmem = pl.BlockSpec(memory_space=pltpu.MemorySpace.VMEM)
    out = pl.pallas_call(
        encoder_kernel,
        out_shape=jax.ShapeDtypeStruct((B, ZDIM), jnp.float32),
        in_specs=[vmem] * 6,
        out_specs=vmem,
        compiler_params=pltpu.CompilerParams(
            vmem_limit_bytes=16 * 1024 * 1024),   # safe on v5e's smaller default
        cost_estimate=_cost_estimate(),
    )(xf, b_all, w1, wA, wB, wC)
    return out


# ---------------------------------------------------------------------------
# Pure-JAX reference (f32, raw unfolded params, eval-mode BN).
# ---------------------------------------------------------------------------
def ref_forward(x, P, eps=EPS):
    def bn(h, g, b, m, v):
        return (h - m) * (g / jnp.sqrt(v + eps)) + b

    h = x
    h = jax.nn.relu(bn(h @ P["wc1"] + P["bc1"], P["g1"], P["be1"], P["m1"], P["v1"]))
    h = jax.nn.relu(bn(h @ P["wc2"] + P["bc2"], P["g2"], P["be2"], P["m2"], P["v2"]))
    h = jax.nn.relu(bn(h @ P["wc3"] + P["bc3"], P["g3"], P["be3"], P["m3"], P["v3"]))
    h = bn(h @ P["wc4"] + P["bc4"], P["g4"], P["be4"], P["m4"], P["v4"])
    g = jnp.max(h, axis=1)  # (B, 512)
    m = jax.nn.relu(bn(g @ P["wf1"] + P["bf1"], P["fg1"], P["fbe1"], P["fm1"], P["fv1"]))
    m = jax.nn.relu(bn(m @ P["wf2"] + P["bf2"], P["fg2"], P["fbe2"], P["fm2"], P["fv2"]))
    return m @ P["wf3"] + P["bf3"]


# ---------------------------------------------------------------------------
# Random parameter construction
# ---------------------------------------------------------------------------
def make_params(key):
    dims = dict(c1=(CIN, C1), c2=(C1, C2), c3=(C2, C3), c4=(C3, C4),
                f1=(C4, F1), f2=(F1, F2), f3=(F2, ZDIM))
    P = {}
    keys = jax.random.split(key, 64)
    k = iter(keys)

    def lin(name, cin, cout):
        P["w" + name] = jax.random.normal(next(k), (cin, cout), jnp.float32) * 0.1
        P["b" + name] = jax.random.normal(next(k), (cout,), jnp.float32) * 0.1

    def bn(c):
        return (1.0 + 0.1 * jax.random.normal(next(k), (c,), jnp.float32),
                0.1 * jax.random.normal(next(k), (c,), jnp.float32),
                0.1 * jax.random.normal(next(k), (c,), jnp.float32),
                jax.random.uniform(next(k), (c,), jnp.float32, 0.5, 1.5))

    # conv1..conv4 (+bn1..bn4)
    for i, key_ in enumerate(["c1", "c2", "c3", "c4"], start=1):
        cin, cout = dims[key_]
        lin(key_, cin, cout)
        P["g%d" % i], P["be%d" % i], P["m%d" % i], P["v%d" % i] = bn(cout)

    # fc1, fc2 (+fc_bn1, fc_bn2), fc3
    for i, key_ in enumerate(["f1", "f2"], start=1):
        cin, cout = dims[key_]
        lin(key_, cin, cout)
        P["fg%d" % i], P["fbe%d" % i], P["fm%d" % i], P["fv%d" % i] = bn(cout)
    lin("f3", *dims["f3"])
    return P


if __name__ == "__main__":
    key = jax.random.PRNGKey(0)
    kx, kp = jax.random.split(key)
    x = jax.random.normal(kx, (B, N, CIN), jnp.float32)   # (batch, n_points, 3)
    P = make_params(kp)

    # Fold BN, pack biases/weights, cast once — outside the per-call path.
    folded = prepare_params(P)

    out = jax.block_until_ready(encoder_forward(x, folded))
    ref = jax.block_until_ready(ref_forward(x, P))

    assert out.shape == (B, ZDIM), out.shape
    # bf16 weights/activations (f32 accumulation) -> relaxed tolerance vs the
    # pure-f32 reference.
    np.testing.assert_allclose(np.asarray(out), np.asarray(ref), rtol=5e-2, atol=2e-2)
    print("KERNEL_OK")
</pallas_src>

<mosaic_0001>
module attributes {stable_mosaic.version = 11 : i64} {
  func.func @encoder_kernel(%arg0: memref<32x3xf32, #tpu.memory_space<vmem>>, %arg1: memref<1x1536xf32, #tpu.memory_space<vmem>>, %arg2: memref<3x128xf32, #tpu.memory_space<vmem>>, %arg3: memref<128x512xbf16, #tpu.memory_space<vmem>>, %arg4: memref<256x640xbf16, #tpu.memory_space<vmem>>, %arg5: memref<512x256xbf16, #tpu.memory_space<vmem>>, %arg6: memref<2x128xf32, #tpu.memory_space<vmem>>) attributes {dimension_semantics = [], scalar_prefetch = 0 : i64, scratch_operands = 0 : i64, tpu.core_type = #tpu.core_type<tc>} {
    %c0 = arith.constant 0 : index
    %c0_0 = arith.constant 0 : index
    %0 = vector.load %arg0[%c0, %c0_0] : memref<32x3xf32, #tpu.memory_space<vmem>>, vector<32x3xf32>
    %c0_1 = arith.constant 0 : index
    %c0_2 = arith.constant 0 : index
    %1 = vector.load %arg1[%c0_1, %c0_2] : memref<1x1536xf32, #tpu.memory_space<vmem>>, vector<1x128xf32>
    %2 = vector.extract_strided_slice %0 {offsets = [0, 0], sizes = [32, 1], strides = [1, 1]} : vector<32x3xf32> to vector<32x1xf32>
    %c0_3 = arith.constant 0 : index
    %c0_4 = arith.constant 0 : index
    %3 = vector.load %arg2[%c0_3, %c0_4] : memref<3x128xf32, #tpu.memory_space<vmem>>, vector<1x128xf32>
    %4 = vector.broadcast %2 : vector<32x1xf32> to vector<32x128xf32>
    %5 = vector.broadcast %3 : vector<1x128xf32> to vector<32x128xf32>
    %6 = arith.mulf %4, %5 : vector<32x128xf32>
    %7 = vector.broadcast %1 : vector<1x128xf32> to vector<32x128xf32>
    %8 = arith.addf %7, %6 : vector<32x128xf32>
    %9 = vector.extract_strided_slice %0 {offsets = [0, 1], sizes = [32, 1], strides = [1, 1]} : vector<32x3xf32> to vector<32x1xf32>
    %c1 = arith.constant 1 : index
    %c0_5 = arith.constant 0 : index
    %10 = vector.load %arg2[%c1, %c0_5] : memref<3x128xf32, #tpu.memory_space<vmem>>, vector<1x128xf32>
    %11 = vector.broadcast %9 : vector<32x1xf32> to vector<32x128xf32>
    %12 = vector.broadcast %10 : vector<1x128xf32> to vector<32x128xf32>
    %13 = arith.mulf %11, %12 : vector<32x128xf32>
    %14 = arith.addf %8, %13 : vector<32x128xf32>
    %15 = vector.extract_strided_slice %0 {offsets = [0, 2], sizes = [32, 1], strides = [1, 1]} : vector<32x3xf32> to vector<32x1xf32>
    %c2 = arith.constant 2 : index
    %c0_6 = arith.constant 0 : index
    %16 = vector.load %arg2[%c2, %c0_6] : memref<3x128xf32, #tpu.memory_space<vmem>>, vector<1x128xf32>
    %17 = vector.broadcast %15 : vector<32x1xf32> to vector<32x128xf32>
    %18 = vector.broadcast %16 : vector<1x128xf32> to vector<32x128xf32>
    %19 = arith.mulf %17, %18 : vector<32x128xf32>
    %20 = arith.addf %14, %19 : vector<32x128xf32>
    %cst = arith.constant 0.000000e+00 : f32
    %21 = vector.broadcast %cst : f32 to vector<32x128xf32>
    %22 = arith.maximumf %20, %21 : vector<32x128xf32>
    %23 = arith.truncf %22 : vector<32x128xf32> to vector<32x128xbf16>
    %c0_7 = arith.constant 0 : index
    %c0_8 = arith.constant 0 : index
    %24 = vector.load %arg3[%c0_7, %c0_8] : memref<128x512xbf16, #tpu.memory_space<vmem>>, vector<128x128xbf16>
    %c0_9 = arith.constant 0 : index
    %c128 = arith.constant 128 : index
    %25 = vector.load %arg1[%c0_9, %c128] : memref<1x1536xf32, #tpu.memory_space<vmem>>, vector<1x128xf32>
    %cst_10 = arith.constant dense<0.000000e+00> : vector<32x128xf32>
    %26 = tpu.matmul %23, %24, %cst_10 {dimension_numbers = #tpu.dot_dimension_numbers<[1], [0], [0], [1], [0, 0, 1, 1], [], []>} : vector<32x128xbf16>, vector<128x128xbf16>, vector<32x128xf32> -> vector<32x128xf32>
    %27 = vector.broadcast %25 : vector<1x128xf32> to vector<32x128xf32>
    %28 = arith.addf %26, %27 : vector<32x128xf32>
    %cst_11 = arith.constant 0.000000e+00 : f32
    %29 = vector.broadcast %cst_11 : f32 to vector<32x128xf32>
    %30 = arith.maximumf %28, %29 : vector<32x128xf32>
    %31 = arith.truncf %30 : vector<32x128xf32> to vector<32x128xbf16>
    %c0_12 = arith.constant 0 : index
    %c128_13 = arith.constant 128 : index
    %32 = vector.load %arg3[%c0_12, %c128_13] : memref<128x512xbf16, #tpu.memory_space<vmem>>, vector<128x256xbf16>
    %c0_14 = arith.constant 0 : index
    %c256 = arith.constant 256 : index
    %33 = vector.load %arg1[%c0_14, %c256] : memref<1x1536xf32, #tpu.memory_space<vmem>>, vector<1x256xf32>
    %cst_15 = arith.constant dense<0.000000e+00> : vector<32x256xf32>
    %34 = tpu.matmul %31, %32, %cst_15 {dimension_numbers = #tpu.dot_dimension_numbers<[1], [0], [0], [1], [0, 0, 1, 1], [], []>} : vector<32x128xbf16>, vector<128x256xbf16>, vector<32x256xf32> -> vector<32x256xf32>
    %35 = vector.broadcast %33 : vector<1x256xf32> to vector<32x256xf32>
    %36 = arith.addf %34, %35 : vector<32x256xf32>
    %cst_16 = arith.constant 0.000000e+00 : f32
    %37 = vector.broadcast %cst_16 : f32 to vector<32x256xf32>
    %38 = arith.maximumf %36, %37 : vector<32x256xf32>
    %39 = arith.truncf %38 : vector<32x256xf32> to vector<32x256xbf16>
    %c0_17 = arith.constant 0 : index
    %c0_18 = arith.constant 0 : index
    %40 = vector.load %arg4[%c0_17, %c0_18] : memref<256x640xbf16, #tpu.memory_space<vmem>>, vector<256x512xbf16>
    %c0_19 = arith.constant 0 : index
    %c512 = arith.constant 512 : index
    %41 = vector.load %arg1[%c0_19, %c512] : memref<1x1536xf32, #tpu.memory_space<vmem>>, vector<1x512xf32>
    %cst_20 = arith.constant dense<0.000000e+00> : vector<32x512xf32>
    %42 = tpu.matmul %39, %40, %cst_20 {dimension_numbers = #tpu.dot_dimension_numbers<[1], [0], [0], [1], [0, 0, 1, 1], [], []>} : vector<32x256xbf16>, vector<256x512xbf16>, vector<32x512xf32> -> vector<32x512xf32>
    %43 = vector.broadcast %41 : vector<1x512xf32> to vector<32x512xf32>
    %44 = arith.addf %42, %43 : vector<32x512xf32>
    %45 = vector.shape_cast %44 : vector<32x512xf32> to vector<2x16x512xf32>
    %cst_21 = arith.constant dense<0xFF800000> : vector<2x512xf32>
    %46 = vector.multi_reduction <maximumf>, %45, %cst_21 [1] : vector<2x16x512xf32> to vector<2x512xf32>
    %47 = arith.truncf %46 : vector<2x512xf32> to vector<2x512xbf16>
    %c0_22 = arith.constant 0 : index
    %c0_23 = arith.constant 0 : index
    %48 = vector.load %arg5[%c0_22, %c0_23] : memref<512x256xbf16, #tpu.memory_space<vmem>>, vector<512x256xbf16>
    %c0_24 = arith.constant 0 : index
    %c1024 = arith.constant 1024 : index
    %49 = vector.load %arg1[%c0_24, %c1024] : memref<1x1536xf32, #tpu.memory_space<vmem>>, vector<1x256xf32>
    %cst_25 = arith.constant dense<0.000000e+00> : vector<2x256xf32>
    %50 = tpu.matmul %47, %48, %cst_25 {dimension_numbers = #tpu.dot_dimension_numbers<[1], [0], [0], [1], [0, 0, 1, 1], [], []>} : vector<2x512xbf16>, vector<512x256xbf16>, vector<2x256xf32> -> vector<2x256xf32>
    %51 = vector.broadcast %49 : vector<1x256xf32> to vector<2x256xf32>
    %52 = arith.addf %50, %51 : vector<2x256xf32>
    %cst_26 = arith.constant 0.000000e+00 : f32
    %53 = vector.broadcast %cst_26 : f32 to vector<2x256xf32>
    %54 = arith.maximumf %52, %53 : vector<2x256xf32>
    %55 = arith.truncf %54 : vector<2x256xf32> to vector<2x256xbf16>
    %c0_27 = arith.constant 0 : index
    %c512_28 = arith.constant 512 : index
    %56 = vector.load %arg4[%c0_27, %c512_28] : memref<256x640xbf16, #tpu.memory_space<vmem>>, vector<256x128xbf16>
    %c0_29 = arith.constant 0 : index
    %c1280 = arith.constant 1280 : index
    %57 = vector.load %arg1[%c0_29, %c1280] : memref<1x1536xf32, #tpu.memory_space<vmem>>, vector<1x128xf32>
    %cst_30 = arith.constant dense<0.000000e+00> : vector<2x128xf32>
    %58 = tpu.matmul %55, %56, %cst_30 {dimension_numbers = #tpu.dot_dimension_numbers<[1], [0], [0], [1], [0, 0, 1, 1], [], []>} : vector<2x256xbf16>, vector<256x128xbf16>, vector<2x128xf32> -> vector<2x128xf32>
    %59 = vector.broadcast %57 : vector<1x128xf32> to vector<2x128xf32>
    %60 = arith.addf %58, %59 : vector<2x128xf32>
    %cst_31 = arith.constant 0.000000e+00 : f32
    %61 = vector.broadcast %cst_31 : f32 to vector<2x128xf32>
    %62 = arith.maximumf %60, %61 : vector<2x128xf32>
    %63 = arith.truncf %62 : vector<2x128xf32> to vector<2x128xbf16>
    %c0_32 = arith.constant 0 : index
    %c384 = arith.constant 384 : index
    %64 = vector.load %arg3[%c0_32, %c384] : memref<128x512xbf16, #tpu.memory_space<vmem>>, vector<128x128xbf16>
    %c0_33 = arith.constant 0 : index
    %c1408 = arith.constant 1408 : index
    %65 = vector.load %arg1[%c0_33, %c1408] : memref<1x1536xf32, #tpu.memory_space<vmem>>, vector<1x128xf32>
    %cst_34 = arith.constant dense<0.000000e+00> : vector<2x128xf32>
    %66 = tpu.matmul %63, %64, %cst_34 {dimension_numbers = #tpu.dot_dimension_numbers<[1], [0], [0], [1], [0, 0, 1, 1], [], []>} : vector<2x128xbf16>, vector<128x128xbf16>, vector<2x128xf32> -> vector<2x128xf32>
    %67 = vector.broadcast %65 : vector<1x128xf32> to vector<2x128xf32>
    %68 = arith.addf %66, %67 : vector<2x128xf32>
    %c0_35 = arith.constant 0 : index
    %c0_36 = arith.constant 0 : index
    %69 = vector.load %arg6[%c0_35, %c0_36] : memref<2x128xf32, #tpu.memory_space<vmem>>, vector<2x128xf32>
    tpu.vector_store %arg6[%c0_35, %c0_36], %68 {strides = array<i32>} : memref<2x128xf32, #tpu.memory_space<vmem>>, vector<2x128xf32>,
    return
  }
}

</mosaic_0001>

<llo_original>
// kernel: encoder_forward.1
$region0: #{encoder_forward.1}
  #allocation0 [shape = 'u32[]', space=smem, size = 0x4, offset = 0x4, fixed_abs, tag = 'smem constant byte address 0x4 - core index']
  #allocation1 [shape = 'u32[144,128]{1,0:T(1,128)}', space=vmem, size = 0x12000, scoped, tag = 'internal scratch']
  %s0 = inlined_call_operand.vmem [shape: f32[32,3], index: 0, kind: input, shape index: {}]
  %s1 = inlined_call_operand.vmem [shape: f32[1,1536], index: 1, kind: input, shape index: {}]
  %s2 = inlined_call_operand.vmem [shape: f32[3,128], index: 2, kind: input, shape index: {}]
  %s3 = inlined_call_operand.hbm [shape: bf16[128,512], index: 3, kind: input, shape index: {}]
  %s4 = inlined_call_operand.hbm [shape: bf16[256,640], index: 4, kind: input, shape index: {}]
  %s5 = inlined_call_operand.hbm [shape: bf16[512,256], index: 5, kind: input, shape index: {}]
  %s6 = inlined_call_operand.hbm [shape: f32[2,128], index: 6, kind: output, shape index: {}]
  %s7 = sld [smem:[#allocation0]]
  $region46: #{encoder_forward.1} parent=0
    _
  %s9 = ssub.s32 1, %s7
  %s10 = scalar_select 0, %s9, %s7
  $region1: #{encoder_forward.1} parent=0
    #allocation2 [shape = 'u8[131072]{0}', space=vmem, size = 0x20000, scoped, tag = 'input window, operand 3, single buffered']
    #allocation3 [shape = 's32[1]{0}', space=sflag, size = 0x4, scoped, tag = 'scoped memory for encoder_forward.1']
    #allocation4 [shape = 's32[1]{0}', space=sflag, size = 0x4, scoped, tag = 'scoped memory for encoder_forward.1']
    #allocation5 [shape = 'u8[327680]{0}', space=vmem, size = 0x50000, scoped, tag = 'input window, operand 4, single buffered']
    #allocation6 [shape = 's32[1]{0}', space=sflag, size = 0x4, scoped, tag = 'scoped memory for encoder_forward.1']
    #allocation7 [shape = 'u8[262144]{0}', space=vmem, size = 0x40000, scoped, tag = 'input window, operand 5, single buffered']
    #allocation8 [shape = 'u8[1024]{0}', space=vmem, size = 0x400, scoped, tag = 'output window, operand 0, single buffered']
    %11 = vsyncpa [#allocation3], 0
    %12 = vsyncpa [#allocation6], 0
    %13 = vsyncpa [#allocation4], 0
    // Predicated region
    $region2: #{encoder_forward.1} parent=1 // pred_check
      _
    $region3: #{encoder_forward.1} parent=1 // pred_check_branch
      %15 = sbr.rel (0) target = $region5
    $region4: #{encoder_forward.1} parent=1 // pred_region
      _
    $region5: #{encoder_forward.1} parent=1 // pred_fallthru
      _
    // Predicated region
    $region6: #{encoder_forward.1} parent=1 // pred_check
      _
    $region7: #{encoder_forward.1} parent=1 // pred_check_branch
      %17 = sbr.rel (0) target = $region9
    $region8: #{encoder_forward.1} parent=1 // pred_region
      _
    $region9: #{encoder_forward.1} parent=1 // pred_fallthru
      _
    // Predicated region
    $region10: #{encoder_forward.1} parent=1 // pred_check
      _
    $region11: #{encoder_forward.1} parent=1 // pred_check_branch
      %19 = sbr.rel (0) target = $region13
    $region12: #{encoder_forward.1} parent=1 // pred_region
      _
    $region13: #{encoder_forward.1} parent=1 // pred_fallthru
      _
    // Predicated region
    $region14: #{encoder_forward.1} parent=1 // pred_check
      _
    $region15: #{encoder_forward.1} parent=1 // pred_check_branch
      %21 = sbr.rel (0) target = $region17
    $region16: #{encoder_forward.1} parent=1 // pred_region
      %s23 = ssub.s32 4096, 4096
      %24 = vsyncadd [#allocation3], %s23
      %s25 = sshll.u32 [#allocation2], 4
      %s26 = int_to_ptr.vmem [resolvable:$true] %s25
      %31 = dma.hbm_to_vmem [thread:$0]  %s3, 4096, %s26, [#allocation3], 256, 256, 16
    $region17: #{encoder_forward.1} parent=1 // pred_fallthru
      _
    // Predicated region
    $region18: #{encoder_forward.1} parent=1 // pred_check
      _
    $region19: #{encoder_forward.1} parent=1 // pred_check_branch
      %33 = sbr.rel (0) target = $region21
    $region20: #{encoder_forward.1} parent=1 // pred_region
      %s35 = ssub.s32 10240, 10240
      %36 = vsyncadd [#allocation6], %s35
      %s37 = sshll.u32 [#allocation5], 4
      %s38 = int_to_ptr.vmem [resolvable:$true] %s37
      %43 = dma.hbm_to_vmem [thread:$0]  %s4, 10240, %s38, [#allocation6], 320, 320, 20
    $region21: #{encoder_forward.1} parent=1 // pred_fallthru
      _
    // Predicated region
    $region22: #{encoder_forward.1} parent=1 // pred_check
      _
    $region23: #{encoder_forward.1} parent=1 // pred_check_branch
      %45 = sbr.rel (0) target = $region25
    $region24: #{encoder_forward.1} parent=1 // pred_region
      %s47 = ssub.s32 8192, 8192
      %48 = vsyncadd [#allocation6], %s47
      %s49 = sshll.u32 [#allocation7], 4
      %s50 = int_to_ptr.vmem [resolvable:$true] %s49
      %55 = dma.hbm_to_vmem [thread:$0]  %s5, 8192, %s50, [#allocation6], 128, 128, 8
    $region25: #{encoder_forward.1} parent=1 // pred_fallthru
      _
    // Predicated region
    $region26: #{encoder_forward.1} parent=1 // pred_check
      _
    $region27: #{encoder_forward.1} parent=1 // pred_check_branch
      %57 = sbr.rel (0) target = $region29
    $region28: #{encoder_forward.1} parent=1 // pred_region
      %58 = dma.done [#allocation3], 4096
    $region29: #{encoder_forward.1} parent=1 // pred_fallthru
      _
    // Predicated region
    $region30: #{encoder_forward.1} parent=1 // pred_check
      _
    $region31: #{encoder_forward.1} parent=1 // pred_check_branch
      %60 = sbr.rel (0) target = $region33
    $region32: #{encoder_forward.1} parent=1 // pred_region
      %61 = dma.done [#allocation6], 10240
    $region33: #{encoder_forward.1} parent=1 // pred_fallthru
      _
    // Predicated region
    $region34: #{encoder_forward.1} parent=1 // pred_check
      _
    $region35: #{encoder_forward.1} parent=1 // pred_check_branch
      %63 = sbr.rel (0) target = $region37
    $region36: #{encoder_forward.1} parent=1 // pred_region
      %64 = dma.done [#allocation6], 8192
    $region37: #{encoder_forward.1} parent=1 // pred_fallthru
      _
    %v66 = vld [vmem:[%s0] sm:$0xff]
    %v67 = vld [vmem:[%s0 + $0x8] sm:$0xff]
    %v68 = vld [vmem:[%s0 + $0x10] sm:$0xff]
    %v69 = vld [vmem:[%s0 + $0x18] sm:$0xff]
    %v70 = vld [vmem:[%s1] sm:$0x1]
    %v71 = vld [vmem:[%s2] sm:$0x1]
    %73 = vset.pattern.permute.xlu0 0
    %74 = vperm.xlu0 %73, %v66
    %v75 = vpop.permute.xlu0 %74
    %78 = vset.pattern.permute.xlu0 0
    %79 = vperm.xlu0 %78, %v67
    %v80 = vpop.permute.xlu0 %79
    %83 = vset.pattern.permute.xlu0 0
    %84 = vperm.xlu0 %83, %v68
    %v85 = vpop.permute.xlu0 %84
    %88 = vset.pattern.permute.xlu0 0
    %89 = vperm.xlu0 %88, %v69
    %v90 = vpop.permute.xlu0 %89
    %v92 = vlaneseq
    %v93 = vshrl.u32 %v92, 7
    %v94 = vsub.s32 0, %v93
    %v95 = vrot.slane %v71, %v94
    %v96 = vmul.f32 %v75, %v95
    %v97 = vmul.f32 %v80, %v95
    %v98 = vmul.f32 %v85, %v95
    %v99 = vmul.f32 %v90, %v95
    %v101 = vlaneseq
    %v102 = vshrl.u32 %v101, 7
    %v103 = vsub.s32 0, %v102
    %v104 = vrot.slane %v70, %v103
    %v106 = vadd.f32 %v104, %v96
    %v107 = vadd.f32 %v104, %v97
    %v108 = vadd.f32 %v104, %v98
    %v109 = vadd.f32 %v104, %v99
    %v110 = vld [vmem:[%s2 + $0x1] sm:$0x1]
    %111 = vset.pattern.permute.xlu0 1
    %112 = vperm.xlu0 %111, %v66
    %v113 = vpop.permute.xlu0 %112
    %115 = vset.pattern.permute.xlu0 1
    %116 = vperm.xlu0 %115, %v67
    %v117 = vpop.permute.xlu0 %116
    %119 = vset.pattern.permute.xlu0 1
    %120 = vperm.xlu0 %119, %v68
    %v121 = vpop.permute.xlu0 %120
    %123 = vset.pattern.permute.xlu0 1
    %124 = vperm.xlu0 %123, %v69
    %v125 = vpop.permute.xlu0 %124
    %v127 = vlaneseq
    %v128 = vshrl.u32 %v127, 7
    %v129 = vsub.s32 0, %v128
    %v130 = vrot.slane %v110, %v129
    %v131 = vmul.f32 %v113, %v130
    %v132 = vmul.f32 %v117, %v130
    %v133 = vmul.f32 %v121, %v130
    %v134 = vmul.f32 %v125, %v130
    %v135 = vadd.f32 %v106, %v131
    %v136 = vadd.f32 %v107, %v132
    %v137 = vadd.f32 %v108, %v133
    %v138 = vadd.f32 %v109, %v134
    %v139 = vld [vmem:[%s2 + $0x2] sm:$0x1]
    %140 = vset.pattern.permute.xlu0 2
    %141 = vperm.xlu0 %140, %v66
    %v142 = vpop.permute.xlu0 %141
    %144 = vset.pattern.permute.xlu0 2
    %145 = vperm.xlu0 %144, %v67
    %v146 = vpop.permute.xlu0 %145
    %148 = vset.pattern.permute.xlu0 2
    %149 = vperm.xlu0 %148, %v68
    %v150 = vpop.permute.xlu0 %149
    %152 = vset.pattern.permute.xlu0 2
    %153 = vperm.xlu0 %152, %v69
    %v154 = vpop.permute.xlu0 %153
    %v156 = vlaneseq
    %v157 = vshrl.u32 %v156, 7
    %v158 = vsub.s32 0, %v157
    %v159 = vrot.slane %v139, %v158
    %v160 = vmul.f32 %v142, %v159
    %v161 = vmul.f32 %v146, %v159
    %v162 = vmul.f32 %v150, %v159
    %v163 = vmul.f32 %v154, %v159
    %v164 = vadd.f32 %v135, %v160
    %v165 = vadd.f32 %v136, %v161
    %v166 = vadd.f32 %v137, %v162
    %v167 = vadd.f32 %v138, %v163
    %v168 = vmax.f32 %v164, 0.0
    %v169 = vmax.f32 %v165, 0.0
    %v170 = vmax.f32 %v166, 0.0
    %v171 = vmax.f32 %v167, 0.0
    %v172 = vpack.c.bf16 %v169, %v168
    %v173 = vpack.c.bf16 %v171, %v170
    %v174 = vld [vmem:[#allocation2] sm:$0xf]
    %v175 = vld [vmem:[#allocation2 + $0x10] sm:$0xf]
    %v176 = vld [vmem:[#allocation2 + $0x20] sm:$0xf]
    %v177 = vld [vmem:[#allocation2 + $0x30] sm:$0xf]
    %v178 = vld [vmem:[#allocation2 + $0x40] sm:$0xf]
    %v179 = vld [vmem:[#allocation2 + $0x50] sm:$0xf]
    %v180 = vld [vmem:[#allocation2 + $0x60] sm:$0xf]
    %v181 = vld [vmem:[#allocation2 + $0x70] sm:$0xf]
    %v182 = vld [vmem:[#allocation2 + $0x80] sm:$0xf]
    %v183 = vld [vmem:[#allocation2 + $0x90] sm:$0xf]
    %v184 = vld [vmem:[#allocation2 + $0xa0] sm:$0xf]
    %v185 = vld [vmem:[#allocation2 + $0xb0] sm:$0xf]
    %v186 = vld [vmem:[#allocation2 + $0xc0] sm:$0xf]
    %v187 = vld [vmem:[#allocation2 + $0xd0] sm:$0xf]
    %v188 = vld [vmem:[#allocation2 + $0xe0] sm:$0xf]
    %v189 = vld [vmem:[#allocation2 + $0xf0] sm:$0xf]
    %v190 = vld [vmem:[%s1 + $0x1] sm:$0x1]
    %v192 = vlaneseq
    %v193 = vshrl.u32 %v192, 7
    %v194 = vsub.s32 0, %v193
    %v195 = vrot.slane %v190, %v194
    %v213 = vunpack.c.l.b16 %v174
    %v214 = vunpack.c.l.b16 %v175
    %v215 = vunpack.c.l.b16 %v176
    %v216 = vunpack.c.l.b16 %v177
    %v217 = vunpack.c.l.b16 %v178
    %v218 = vunpack.c.l.b16 %v179
    %v219 = vunpack.c.l.b16 %v180
    %v220 = vunpack.c.l.b16 %v181
    %v221 = vunpack.c.l.b16 %v182
    %v222 = vunpack.c.l.b16 %v183
    %v223 = vunpack.c.l.b16 %v184
    %v224 = vunpack.c.l.b16 %v185
    %v225 = vunpack.c.l.b16 %v186
    %v226 = vunpack.c.l.b16 %v187
    %v227 = vunpack.c.l.b16 %v188
    %v228 = vunpack.c.l.b16 %v189
    %v229 = vpack.c.b16 %v214, %v213
    %v230 = vpack.c.b16 %v216, %v215
    %v231 = vpack.c.b16 %v218, %v217
    %v232 = vpack.c.b16 %v220, %v219
    %v233 = vpack.c.b16 %v222, %v221
    %v234 = vpack.c.b16 %v224, %v223
    %v235 = vpack.c.b16 %v226, %v225
    %v236 = vpack.c.b16 %v228, %v227
    %245 = vmatprep.subr.bf16.mxu0 0
    %246 = vmatpush1.bf16.msra.mxu0 %v236
    %247 = vmatprep.subr.bf16.mxu0 0
    %248 = vmatpush1.bf16.msra.mxu0 %v235
    %249 = vmatprep.subr.bf16.mxu0 0
    %250 = vmatpush1.bf16.msra.mxu0 %v234
    %251 = vmatprep.subr.bf16.mxu0 0
    %252 = vmatpush1.bf16.msra.mxu0 %v233
    %253 = vmatprep.subr.bf16.mxu0 0
    %254 = vmatpush1.bf16.msra.mxu0 %v232
    %255 = vmatprep.subr.bf16.mxu0 0
    %256 = vmatpush1.bf16.msra.mxu0 %v231
    %257 = vmatprep.subr.bf16.mxu0 0
    %258 = vmatpush1.bf16.msra.mxu0 %v230
    %259 = vmatprep.subr.bf16.mxu0 0
    %260 = vmatpush1.bf16.msra.mxu0 %v229
    %261 = vmatprep.subr.bf16.mxu0 0
    %262 = vmatpush2.bf16.msra.mxu0 0
    %263 = vmatprep.subr.bf16.mxu0 0
    %264 = vmatpush2.bf16.msra.mxu0 0
    %265 = vmatprep.subr.bf16.mxu0 0
    %266 = vmatpush2.bf16.msra.mxu0 0
    %267 = vmatprep.subr.bf16.mxu0 0
    %268 = vmatpush2.bf16.msra.mxu0 0
    %269 = vmatprep.subr.bf16.mxu0 0
    %270 = vmatpush2.bf16.msra.mxu0 0
    %271 = vmatprep.subr.bf16.mxu0 0
    %272 = vmatpush2.bf16.msra.mxu0 0
    %273 = vmatprep.subr.bf16.mxu0 0
    %274 = vmatpush2.bf16.msra.mxu0 0
    %275 = vmatprep.subr.bf16.mxu0 0
    %276 = vmatpush2.bf16.msra.mxu0 0
    %277 = vmatprep.mubr.bf16.mxu0 0
    %278 = vmatmul.mubr.bf16.gmra.mxu0 %v172
    %v279 = vpop.f32.mrf.mxu0
    %v280 = vadd.f32 %v195, %v279
    %v281 = vpop.f32.mrf.mxu0
    %v282 = vpop.f32.mrf.mxu0
    %v283 = vadd.f32 %v195, %v282
    %v284 = vpop.f32.mrf.mxu0
    %285 = vmatprep.mubr.bf16.mxu0 0
    %286 = vmatmul.mubr.bf16.gmra.mxu0 %v173
    %v287 = vpop.f32.mrf.mxu0
    %v288 = vadd.f32 %v195, %v287
    %v289 = vpop.f32.mrf.mxu0
    %v290 = vpop.f32.mrf.mxu0
    %v291 = vadd.f32 %v195, %v290
    %v292 = vpop.f32.mrf.mxu0
    %293 = vdwg.mxu0
    %v294 = vmax.f32 %v280, 0.0
    %v295 = vmax.f32 %v283, 0.0
    %v296 = vmax.f32 %v288, 0.0
    %v297 = vmax.f32 %v291, 0.0
    %v298 = vpack.c.bf16 %v295, %v294
    %v299 = vpack.c.bf16 %v297, %v296
    %v300 = vld [vmem:[#allocation2 + $0x4] sm:$0xff]
    %v301 = vld [vmem:[#allocation2 + $0x14] sm:$0xff]
    %v302 = vld [vmem:[#allocation2 + $0x24] sm:$0xff]
    %v303 = vld [vmem:[#allocation2 + $0x34] sm:$0xff]
    %v304 = vld [vmem:[#allocation2 + $0x44] sm:$0xff]
    %v305 = vld [vmem:[#allocation2 + $0x54] sm:$0xff]
    %v306 = vld [vmem:[#allocation2 + $0x64] sm:$0xff]
    %v307 = vld [vmem:[#allocation2 + $0x74] sm:$0xff]
    %v308 = vld [vmem:[#allocation2 + $0x84] sm:$0xff]
    %v309 = vld [vmem:[#allocation2 + $0x94] sm:$0xff]
    %v310 = vld [vmem:[#allocation2 + $0xa4] sm:$0xff]
    %v311 = vld [vmem:[#allocation2 + $0xb4] sm:$0xff]
    %v312 = vld [vmem:[#allocation2 + $0xc4] sm:$0xff]
    %v313 = vld [vmem:[#allocation2 + $0xd4] sm:$0xff]
    %v314 = vld [vmem:[#allocation2 + $0xe4] sm:$0xff]
    %v315 = vld [vmem:[#allocation2 + $0xf4] sm:$0xff]
    %v316 = vld [vmem:[%s1 + $0x2] sm:$0x3]
    %v318 = vlaneseq
    %v319 = vshrl.u32 %v318, 7
    %v320 = vsub.s32 0, %v319
    %v321 = vrot.slane %v316, %v320
    %v322 = vlaneseq
    %v323 = vshrl.u32 %v322, 7
    %v324 = vsub.s32 1, %v323
    %v325 = vrot.slane %v316, %v324
    %v344 = vunpack.c.l.b16 %v300
    %v345 = vunpack.c.h.b16 %v300
    %v346 = vunpack.c.l.b16 %v301
    %v347 = vunpack.c.h.b16 %v301
    %v348 = vunpack.c.l.b16 %v302
    %v349 = vunpack.c.h.b16 %v302
    %v350 = vunpack.c.l.b16 %v303
    %v351 = vunpack.c.h.b16 %v303
    %v352 = vunpack.c.l.b16 %v304
    %v353 = vunpack.c.h.b16 %v304
    %v354 = vunpack.c.l.b16 %v305
    %v355 = vunpack.c.h.b16 %v305
    %v356 = vunpack.c.l.b16 %v306
    %v357 = vunpack.c.h.b16 %v306
    %v358 = vunpack.c.l.b16 %v307
    %v359 = vunpack.c.h.b16 %v307
    %v360 = vunpack.c.l.b16 %v308
    %v361 = vunpack.c.h.b16 %v308
    %v362 = vunpack.c.l.b16 %v309
    %v363 = vunpack.c.h.b16 %v309
    %v364 = vunpack.c.l.b16 %v310
    %v365 = vunpack.c.h.b16 %v310
    %v366 = vunpack.c.l.b16 %v311
    %v367 = vunpack.c.h.b16 %v311
    %v368 = vunpack.c.l.b16 %v312
    %v369 = vunpack.c.h.b16 %v312
    %v370 = vunpack.c.l.b16 %v313
    %v371 = vunpack.c.h.b16 %v313
    %v372 = vunpack.c.l.b16 %v314
    %v373 = vunpack.c.h.b16 %v314
    %v374 = vunpack.c.l.b16 %v315
    %v375 = vunpack.c.h.b16 %v315
    %v376 = vpack.c.b16 %v346, %v344
    %v377 = vpack.c.b16 %v347, %v345
    %v378 = vpack.c.b16 %v350, %v348
    %v379 = vpack.c.b16 %v351, %v349
    %v380 = vpack.c.b16 %v354, %v352
    %v381 = vpack.c.b16 %v355, %v353
    %v382 = vpack.c.b16 %v358, %v356
    %v383 = vpack.c.b16 %v359, %v357
    %v384 = vpack.c.b16 %v362, %v360
    %v385 = vpack.c.b16 %v363, %v361
    %v386 = vpack.c.b16 %v366, %v364
    %v387 = vpack.c.b16 %v367, %v365
    %v388 = vpack.c.b16 %v370, %v368
    %v389 = vpack.c.b16 %v371, %v369
    %v390 = vpack.c.b16 %v374, %v372
    %v391 = vpack.c.b16 %v375, %v373
    %408 = vmatprep.subr.bf16.mxu0 %v391
    %409 = vmatpush1.bf16.msra.mxu0 %v390
    %410 = vmatprep.subr.bf16.mxu0 %v389
    %411 = vmatpush1.bf16.msra.mxu0 %v388
    %412 = vmatprep.subr.bf16.mxu0 %v387
    %413 = vmatpush1.bf16.msra.mxu0 %v386
    %414 = vmatprep.subr.bf16.mxu0 %v385
    %415 = vmatpush1.bf16.msra.mxu0 %v384
    %416 = vmatprep.subr.bf16.mxu0 %v383
    %417 = vmatpush1.bf16.msra.mxu0 %v382
    %418 = vmatprep.subr.bf16.mxu0 %v381
    %419 = vmatpush1.bf16.msra.mxu0 %v380
    %420 = vmatprep.subr.bf16.mxu0 %v379
    %421 = vmatpush1.bf16.msra.mxu0 %v378
    %422 = vmatprep.subr.bf16.mxu0 %v377
    %423 = vmatpush1.bf16.msra.mxu0 %v376
    %424 = vmatprep.subr.bf16.mxu0 0
    %425 = vmatpush2.bf16.msra.mxu0 0
    %426 = vmatprep.subr.bf16.mxu0 0
    %427 = vmatpush2.bf16.msra.mxu0 0
    %428 = vmatprep.subr.bf16.mxu0 0
    %429 = vmatpush2.bf16.msra.mxu0 0
    %430 = vmatprep.subr.bf16.mxu0 0
    %431 = vmatpush2.bf16.msra.mxu0 0
    %432 = vmatprep.subr.bf16.mxu0 0
    %433 = vmatpush2.bf16.msra.mxu0 0
    %434 = vmatprep.subr.bf16.mxu0 0
    %435 = vmatpush2.bf16.msra.mxu0 0
    %436 = vmatprep.subr.bf16.mxu0 0
    %437 = vmatpush2.bf16.msra.mxu0 0
    %438 = vmatprep.subr.bf16.mxu0 0
    %439 = vmatpush2.bf16.msra.mxu0 0
    %440 = vmatprep.mubr.bf16.mxu0 0
    %441 = vmatmul.mubr.bf16.gmra.mxu0 %v298
    %v442 = vpop.f32.mrf.mxu0
    %v443 = vadd.f32 %v321, %v442
    %v444 = vpop.f32.mrf.mxu0
    %v445 = vadd.f32 %v325, %v444
    %v446 = vpop.f32.mrf.mxu0
    %v447 = vadd.f32 %v321, %v446
    %v448 = vpop.f32.mrf.mxu0
    %v449 = vadd.f32 %v325, %v448
    %450 = vmatprep.mubr.bf16.mxu0 0
    %451 = vmatmul.mubr.bf16.gmra.mxu0 %v299
    %v452 = vpop.f32.mrf.mxu0
    %v453 = vadd.f32 %v321, %v452
    %v454 = vpop.f32.mrf.mxu0
    %v455 = vadd.f32 %v325, %v454
    %v456 = vpop.f32.mrf.mxu0
    %v457 = vadd.f32 %v321, %v456
    %v458 = vpop.f32.mrf.mxu0
    %v459 = vadd.f32 %v325, %v458
    %460 = vdwg.mxu0
    %v461 = vmax.f32 %v443, 0.0
    %v462 = vmax.f32 %v445, 0.0
    %v463 = vmax.f32 %v447, 0.0
    %v464 = vmax.f32 %v449, 0.0
    %v465 = vmax.f32 %v453, 0.0
    %v466 = vmax.f32 %v455, 0.0
    %v467 = vmax.f32 %v457, 0.0
    %v468 = vmax.f32 %v459, 0.0
    %v469 = vpack.c.bf16 %v463, %v461
    %v470 = vpack.c.bf16 %v464, %v462
    %v471 = vpack.c.bf16 %v467, %v465
    %v472 = vpack.c.bf16 %v468, %v466
    %v473 = vld [vmem:[#allocation5] sm:$0xff]
    %v474 = vld [vmem:[#allocation5 + $0x8] sm:$0xff]
    %v475 = vld [vmem:[#allocation5 + $0x14] sm:$0xff]
    %v476 = vld [vmem:[#allocation5 + $0x1c] sm:$0xff]
    %v477 = vld [vmem:[#allocation5 + $0x28] sm:$0xff]
    %v478 = vld [vmem:[#allocation5 + $0x30] sm:$0xff]
    %v479 = vld [vmem:[#allocation5 + $0x3c] sm:$0xff]
    %v480 = vld [vmem:[#allocation5 + $0x44] sm:$0xff]
    %v481 = vld [vmem:[#allocation5 + $0x50] sm:$0xff]
    %v482 = vld [vmem:[#allocation5 + $0x58] sm:$0xff]
    %v483 = vld [vmem:[#allocation5 + $0x64] sm:$0xff]
    %v484 = vld [vmem:[#allocation5 + $0x6c] sm:$0xff]
    %v485 = vld [vmem:[#allocation5 + $0x78] sm:$0xff]
    %v486 = vld [vmem:[#allocation5 + $0x80] sm:$0xff]
    %v487 = vld [vmem:[#allocation5 + $0x8c] sm:$0xff]
    %v488 = vld [vmem:[#allocation5 + $0x94] sm:$0xff]
    %v489 = vld [vmem:[#allocation5 + $0xa0] sm:$0xff]
    %v490 = vld [vmem:[#allocation5 + $0xa8] sm:$0xff]
    %v491 = vld [vmem:[#allocation5 + $0xb4] sm:$0xff]
    %v492 = vld [vmem:[#allocation5 + $0xbc] sm:$0xff]
    %v493 = vld [vmem:[#allocation5 + $0xc8] sm:$0xff]
    %v494 = vld [vmem:[#allocation5 + $0xd0] sm:$0xff]
    %v495 = vld [vmem:[#allocation5 + $0xdc] sm:$0xff]
    %v496 = vld [vmem:[#allocation5 + $0xe4] sm:$0xff]
    %v497 = vld [vmem:[#allocation5 + $0xf0] sm:$0xff]
    %v498 = vld [vmem:[#allocation5 + $0xf8] sm:$0xff]
    %v499 = vld [vmem:[#allocation5 + $0x104] sm:$0xff]
    %v500 = vld [vmem:[#allocation5 + $0x10c] sm:$0xff]
    %v501 = vld [vmem:[#allocation5 + $0x118] sm:$0xff]
    %v502 = vld [vmem:[#allocation5 + $0x120] sm:$0xff]
    %v503 = vld [vmem:[#allocation5 + $0x12c] sm:$0xff]
    %v504 = vld [vmem:[#allocation5 + $0x134] sm:$0xff]
    %v505 = vld [vmem:[#allocation5 + $0x140] sm:$0xff]
    %v506 = vld [vmem:[#allocation5 + $0x148] sm:$0xff]
    %v507 = vld [vmem:[#allocation5 + $0x154] sm:$0xff]
    %v508 = vld [vmem:[#allocation5 + $0x15c] sm:$0xff]
    %v509 = vld [vmem:[#allocation5 + $0x168] sm:$0xff]
    %v510 = vld [vmem:[#allocation5 + $0x170] sm:$0xff]
    %v511 = vld [vmem:[#allocation5 + $0x17c] sm:$0xff]
    %v512 = vld [vmem:[#allocation5 + $0x184] sm:$0xff]
    %v513 = vld [vmem:[#allocation5 + $0x190] sm:$0xff]
    %v514 = vld [vmem:[#allocation5 + $0x198] sm:$0xff]
    %v515 = vld [vmem:[#allocation5 + $0x1a4] sm:$0xff]
    %v516 = vld [vmem:[#allocation5 + $0x1ac] sm:$0xff]
    %v517 = vld [vmem:[#allocation5 + $0x1b8] sm:$0xff]
    %v518 = vld [vmem:[#allocation5 + $0x1c0] sm:$0xff]
    %v519 = vld [vmem:[#allocation5 + $0x1cc] sm:$0xff]
    %v520 = vld [vmem:[#allocation5 + $0x1d4] sm:$0xff]
    %v521 = vld [vmem:[#allocation5 + $0x1e0] sm:$0xff]
    %v522 = vld [vmem:[#allocation5 + $0x1e8] sm:$0xff]
    %v523 = vld [vmem:[#allocation5 + $0x1f4] sm:$0xff]
    %v524 = vld [vmem:[#allocation5 + $0x1fc] sm:$0xff]
    %v525 = vld [vmem:[#allocation5 + $0x208] sm:$0xff]
    %v526 = vld [vmem:[#allocation5 + $0x210] sm:$0xff]
    %v527 = vld [vmem:[#allocation5 + $0x21c] sm:$0xff]
    %v528 = vld [vmem:[#allocation5 + $0x224] sm:$0xff]
    %v529 = vld [vmem:[#allocation5 + $0x230] sm:$0xff]
    %v530 = vld [vmem:[#allocation5 + $0x238] sm:$0xff]
    %v531 = vld [vmem:[#allocation5 + $0x244] sm:$0xff]
    %v532 = vld [vmem:[#allocation5 + $0x24c] sm:$0xff]
    %v533 = vld [vmem:[#allocation5 + $0x258] sm:$0xff]
    %v534 = vld [vmem:[#allocation5 + $0x260] sm:$0xff]
    %v535 = vld [vmem:[#allocation5 + $0x26c] sm:$0xff]
    %v536 = vld [vmem:[#allocation5 + $0x274] sm:$0xff]
    %v537 = vld [vmem:[%s1 + $0x4] sm:$0xf]
    %v539 = vlaneseq
    %v540 = vshrl.u32 %v539, 7
    %v541 = vsub.s32 0, %v540
    %v542 = vrot.slane %v537, %v541
    %v543 = vlaneseq
    %v544 = vshrl.u32 %v543, 7
    %v545 = vsub.s32 1, %v544
    %v546 = vrot.slane %v537, %v545
    %v547 = vlaneseq
    %v548 = vshrl.u32 %v547, 7
    %v549 = vsub.s32 2, %v548
    %v550 = vrot.slane %v537, %v549
    %v551 = vlaneseq
    %v552 = vshrl.u32 %v551, 7
    %v553 = vsub.s32 3, %v552
    %v554 = vrot.slane %v537, %v553
    %v623 = vunpack.c.l.b16 %v473
    %v624 = vunpack.c.h.b16 %v473
    %v625 = vunpack.c.l.b16 %v474
    %v626 = vunpack.c.h.b16 %v474
    %v627 = vunpack.c.l.b16 %v475
    %v628 = vunpack.c.h.b16 %v475
    %v629 = vunpack.c.l.b16 %v476
    %v630 = vunpack.c.h.b16 %v476
    %v631 = vunpack.c.l.b16 %v477
    %v632 = vunpack.c.h.b16 %v477
    %v633 = vunpack.c.l.b16 %v478
    %v634 = vunpack.c.h.b16 %v478
    %v635 = vunpack.c.l.b16 %v479
    %v636 = vunpack.c.h.b16 %v479
    %v637 = vunpack.c.l.b16 %v480
    %v638 = vunpack.c.h.b16 %v480
    %v639 = vunpack.c.l.b16 %v481
    %v640 = vunpack.c.h.b16 %v481
    %v641 = vunpack.c.l.b16 %v482
    %v642 = vunpack.c.h.b16 %v482
    %v643 = vunpack.c.l.b16 %v483
    %v644 = vunpack.c.h.b16 %v483
    %v645 = vunpack.c.l.b16 %v484
    %v646 = vunpack.c.h.b16 %v484
    %v647 = vunpack.c.l.b16 %v485
    %v648 = vunpack.c.h.b16 %v485
    %v649 = vunpack.c.l.b16 %v486
    %v650 = vunpack.c.h.b16 %v486
    %v651 = vunpack.c.l.b16 %v487
    %v652 = vunpack.c.h.b16 %v487
    %v653 = vunpack.c.l.b16 %v488
    %v654 = vunpack.c.h.b16 %v488
    %v655 = vunpack.c.l.b16 %v489
    %v656 = vunpack.c.h.b16 %v489
    %v657 = vunpack.c.l.b16 %v490
    %v658 = vunpack.c.h.b16 %v490
    %v659 = vunpack.c.l.b16 %v491
    %v660 = vunpack.c.h.b16 %v491
    %v661 = vunpack.c.l.b16 %v492
    %v662 = vunpack.c.h.b16 %v492
    %v663 = vunpack.c.l.b16 %v493
    %v664 = vunpack.c.h.b16 %v493
    %v665 = vunpack.c.l.b16 %v494
    %v666 = vunpack.c.h.b16 %v494
    %v667 = vunpack.c.l.b16 %v495
    %v668 = vunpack.c.h.b16 %v495
    %v669 = vunpack.c.l.b16 %v496
    %v670 = vunpack.c.h.b16 %v496
    %v671 = vunpack.c.l.b16 %v497
    %v672 = vunpack.c.h.b16 %v497
    %v673 = vunpack.c.l.b16 %v498
    %v674 = vunpack.c.h.b16 %v498
    %v675 = vunpack.c.l.b16 %v499
    %v676 = vunpack.c.h.b16 %v499
    %v677 = vunpack.c.l.b16 %v500
    %v678 = vunpack.c.h.b16 %v500
    %v679 = vunpack.c.l.b16 %v501
    %v680 = vunpack.c.h.b16 %v501
    %v681 = vunpack.c.l.b16 %v502
    %v682 = vunpack.c.h.b16 %v502
    %v683 = vunpack.c.l.b16 %v503
    %v684 = vunpack.c.h.b16 %v503
    %v685 = vunpack.c.l.b16 %v504
    %v686 = vunpack.c.h.b16 %v504
    %v687 = vunpack.c.l.b16 %v505
    %v688 = vunpack.c.h.b16 %v505
    %v689 = vunpack.c.l.b16 %v506
    %v690 = vunpack.c.h.b16 %v506
    %v691 = vunpack.c.l.b16 %v507
    %v692 = vunpack.c.h.b16 %v507
    %v693 = vunpack.c.l.b16 %v508
    %v694 = vunpack.c.h.b16 %v508
    %v695 = vunpack.c.l.b16 %v509
    %v696 = vunpack.c.h.b16 %v509
    %v697 = vunpack.c.l.b16 %v510
    %v698 = vunpack.c.h.b16 %v510
    %v699 = vunpack.c.l.b16 %v511
    %v700 = vunpack.c.h.b16 %v511
    %v701 = vunpack.c.l.b16 %v512
    %v702 = vunpack.c.h.b16 %v512
    %v703 = vunpack.c.l.b16 %v513
    %v704 = vunpack.c.h.b16 %v513
    %v705 = vunpack.c.l.b16 %v514
    %v706 = vunpack.c.h.b16 %v514
    %v707 = vunpack.c.l.b16 %v515
    %v708 = vunpack.c.h.b16 %v515
    %v709 = vunpack.c.l.b16 %v516
    %v710 = vunpack.c.h.b16 %v516
    %v711 = vunpack.c.l.b16 %v517
    %v712 = vunpack.c.h.b16 %v517
    %v713 = vunpack.c.l.b16 %v518
    %v714 = vunpack.c.h.b16 %v518
    %v715 = vunpack.c.l.b16 %v519
    %v716 = vunpack.c.h.b16 %v519
    %v717 = vunpack.c.l.b16 %v520
    %v718 = vunpack.c.h.b16 %v520
    %v719 = vunpack.c.l.b16 %v521
    %v720 = vunpack.c.h.b16 %v521
    %v721 = vunpack.c.l.b16 %v522
    %v722 = vunpack.c.h.b16 %v522
    %v723 = vunpack.c.l.b16 %v523
    %v724 = vunpack.c.h.b16 %v523
    %v725 = vunpack.c.l.b16 %v524
    %v726 = vunpack.c.h.b16 %v524
    %v727 = vunpack.c.l.b16 %v525
    %v728 = vunpack.c.h.b16 %v525
    %v729 = vunpack.c.l.b16 %v526
    %v730 = vunpack.c.h.b16 %v526
    %v731 = vunpack.c.l.b16 %v527
    %v732 = vunpack.c.h.b16 %v527
    %v733 = vunpack.c.l.b16 %v528
    %v734 = vunpack.c.h.b16 %v528
    %v735 = vunpack.c.l.b16 %v529
    %v736 = vunpack.c.h.b16 %v529
    %v737 = vunpack.c.l.b16 %v530
    %v738 = vunpack.c.h.b16 %v530
    %v739 = vunpack.c.l.b16 %v531
    %v740 = vunpack.c.h.b16 %v531
    %v741 = vunpack.c.l.b16 %v532
    %v742 = vunpack.c.h.b16 %v532
    %v743 = vunpack.c.l.b16 %v533
    %v744 = vunpack.c.h.b16 %v533
    %v745 = vunpack.c.l.b16 %v534
    %v746 = vunpack.c.h.b16 %v534
    %v747 = vunpack.c.l.b16 %v535
    %v748 = vunpack.c.h.b16 %v535
    %v749 = vunpack.c.l.b16 %v536
    %v750 = vunpack.c.h.b16 %v536
    %v751 = vpack.c.b16 %v627, %v623
    %v752 = vpack.c.b16 %v628, %v624
    %v753 = vpack.c.b16 %v629, %v625
    %v754 = vpack.c.b16 %v630, %v626
    %v755 = vpack.c.b16 %v635, %v631
    %v756 = vpack.c.b16 %v636, %v632
    %v757 = vpack.c.b16 %v637, %v633
    %v758 = vpack.c.b16 %v638, %v634
    %v759 = vpack.c.b16 %v643, %v639
    %v760 = vpack.c.b16 %v644, %v640
    %v761 = vpack.c.b16 %v645, %v641
    %v762 = vpack.c.b16 %v646, %v642
    %v763 = vpack.c.b16 %v651, %v647
    %v764 = vpack.c.b16 %v652, %v648
    %v765 = vpack.c.b16 %v653, %v649
    %v766 = vpack.c.b16 %v654, %v650
    %v767 = vpack.c.b16 %v659, %v655
    %v768 = vpack.c.b16 %v660, %v656
    %v769 = vpack.c.b16 %v661, %v657
    %v770 = vpack.c.b16 %v662, %v658
    %v771 = vpack.c.b16 %v667, %v663
    %v772 = vpack.c.b16 %v668, %v664
    %v773 = vpack.c.b16 %v669, %v665
    %v774 = vpack.c.b16 %v670, %v666
    %v775 = vpack.c.b16 %v675, %v671
    %v776 = vpack.c.b16 %v676, %v672
    %v777 = vpack.c.b16 %v677, %v673
    %v778 = vpack.c.b16 %v678, %v674
    %v779 = vpack.c.b16 %v683, %v679
    %v780 = vpack.c.b16 %v684, %v680
    %v781 = vpack.c.b16 %v685, %v681
    %v782 = vpack.c.b16 %v686, %v682
    %v783 = vpack.c.b16 %v691, %v687
    %v784 = vpack.c.b16 %v692, %v688
    %v785 = vpack.c.b16 %v693, %v689
    %v786 = vpack.c.b16 %v694, %v690
    %v787 = vpack.c.b16 %v699, %v695
    %v788 = vpack.c.b16 %v700, %v696
    %v789 = vpack.c.b16 %v701, %v697
    %v790 = vpack.c.b16 %v702, %v698
    %v791 = vpack.c.b16 %v707, %v703
    %v792 = vpack.c.b16 %v708, %v704
    %v793 = vpack.c.b16 %v709, %v705
    %v794 = vpack.c.b16 %v710, %v706
    %v795 = vpack.c.b16 %v715, %v711
    %v796 = vpack.c.b16 %v716, %v712
    %v797 = vpack.c.b16 %v717, %v713
    %v798 = vpack.c.b16 %v718, %v714
    %v799 = vpack.c.b16 %v723, %v719
    %v800 = vpack.c.b16 %v724, %v720
    %v801 = vpack.c.b16 %v725, %v721
    %v802 = vpack.c.b16 %v726, %v722
    %v803 = vpack.c.b16 %v731, %v727
    %v804 = vpack.c.b16 %v732, %v728
    %v805 = vpack.c.b16 %v733, %v729
    %v806 = vpack.c.b16 %v734, %v730
    %v807 = vpack.c.b16 %v739, %v735
    %v808 = vpack.c.b16 %v740, %v736
    %v809 = vpack.c.b16 %v741, %v737
    %v810 = vpack.c.b16 %v742, %v738
    %v811 = vpack.c.b16 %v747, %v743
    %v812 = vpack.c.b16 %v748, %v744
    %v813 = vpack.c.b16 %v749, %v745
    %v814 = vpack.c.b16 %v750, %v746
    %879 = vmatprep.subr.bf16.mxu0 %v780
    %880 = vmatpush1.bf16.msra.mxu0 %v779
    %881 = vmatprep.subr.bf16.mxu0 %v776
    %882 = vmatpush1.bf16.msra.mxu0 %v775
    %883 = vmatprep.subr.bf16.mxu0 %v772
    %884 = vmatpush1.bf16.msra.mxu0 %v771
    %885 = vmatprep.subr.bf16.mxu0 %v768
    %886 = vmatpush1.bf16.msra.mxu0 %v767
    %887 = vmatprep.subr.bf16.mxu0 %v764
    %888 = vmatpush1.bf16.msra.mxu0 %v763
    %889 = vmatprep.subr.bf16.mxu0 %v760
    %890 = vmatpush1.bf16.msra.mxu0 %v759
    %891 = vmatprep.subr.bf16.mxu0 %v756
    %892 = vmatpush1.bf16.msra.mxu0 %v755
    %893 = vmatprep.subr.bf16.mxu0 %v752
    %894 = vmatpush1.bf16.msra.mxu0 %v751
    %895 = vmatprep.subr.bf16.mxu0 %v812
    %896 = vmatpush2.bf16.msra.mxu0 %v811
    %897 = vmatprep.subr.bf16.mxu0 %v808
    %898 = vmatpush2.bf16.msra.mxu0 %v807
    %899 = vmatprep.subr.bf16.mxu0 %v804
    %900 = vmatpush2.bf16.msra.mxu0 %v803
    %901 = vmatprep.subr.bf16.mxu0 %v800
    %902 = vmatpush2.bf16.msra.mxu0 %v799
    %903 = vmatprep.subr.bf16.mxu0 %v796
    %904 = vmatpush2.bf16.msra.mxu0 %v795
    %905 = vmatprep.subr.bf16.mxu0 %v792
    %906 = vmatpush2.bf16.msra.mxu0 %v791
    %907 = vmatprep.subr.bf16.mxu0 %v788
    %908 = vmatpush2.bf16.msra.mxu0 %v787
    %909 = vmatprep.subr.bf16.mxu0 %v784
    %910 = vmatpush2.bf16.msra.mxu0 %v783
    %911 = vmatprep.mubr.bf16.mxu0 %v470
    %912 = vmatmul.mubr.bf16.gmra.mxu0 %v469
    %v913 = vpop.f32.mrf.mxu0
    %v914 = vadd.f32 %v542, %v913
    %v915 = vpop.f32.mrf.mxu0
    %v916 = vadd.f32 %v546, %v915
    %v917 = vpop.f32.mrf.mxu0
    %v918 = vadd.f32 %v542, %v917
    %v919 = vpop.f32.mrf.mxu0
    %v920 = vadd.f32 %v546, %v919
    %921 = vmatprep.mubr.bf16.mxu0 %v472
    %922 = vmatmul.mubr.bf16.gmra.mxu0 %v471
    %v923 = vpop.f32.mrf.mxu0
    %v924 = vadd.f32 %v542, %v923
    %v925 = vpop.f32.mrf.mxu0
    %v926 = vadd.f32 %v546, %v925
    %v927 = vpop.f32.mrf.mxu0
    %v928 = vadd.f32 %v542, %v927
    %v929 = vpop.f32.mrf.mxu0
    %v930 = vadd.f32 %v546, %v929
    %931 = vdwg.mxu0
    %932 = vmatprep.subr.bf16.mxu0 %v782
    %933 = vmatpush1.bf16.msra.mxu0 %v781
    %934 = vmatprep.subr.bf16.mxu0 %v778
    %935 = vmatpush1.bf16.msra.mxu0 %v777
    %936 = vmatprep.subr.bf16.mxu0 %v774
    %937 = vmatpush1.bf16.msra.mxu0 %v773
    %938 = vmatprep.subr.bf16.mxu0 %v770
    %939 = vmatpush1.bf16.msra.mxu0 %v769
    %940 = vmatprep.subr.bf16.mxu0 %v766
    %941 = vmatpush1.bf16.msra.mxu0 %v765
    %942 = vmatprep.subr.bf16.mxu0 %v762
    %943 = vmatpush1.bf16.msra.mxu0 %v761
    %944 = vmatprep.subr.bf16.mxu0 %v758
    %945 = vmatpush1.bf16.msra.mxu0 %v757
    %946 = vmatprep.subr.bf16.mxu0 %v754
    %947 = vmatpush1.bf16.msra.mxu0 %v753
    %948 = vmatprep.subr.bf16.mxu0 %v814
    %949 = vmatpush2.bf16.msra.mxu0 %v813
    %950 = vmatprep.subr.bf16.mxu0 %v810
    %951 = vmatpush2.bf16.msra.mxu0 %v809
    %952 = vmatprep.subr.bf16.mxu0 %v806
    %953 = vmatpush2.bf16.msra.mxu0 %v805
    %954 = vmatprep.subr.bf16.mxu0 %v802
    %955 = vmatpush2.bf16.msra.mxu0 %v801
    %956 = vmatprep.subr.bf16.mxu0 %v798
    %957 = vmatpush2.bf16.msra.mxu0 %v797
    %958 = vmatprep.subr.bf16.mxu0 %v794
    %959 = vmatpush2.bf16.msra.mxu0 %v793
    %960 = vmatprep.subr.bf16.mxu0 %v790
    %961 = vmatpush2.bf16.msra.mxu0 %v789
    %962 = vmatprep.subr.bf16.mxu0 %v786
    %963 = vmatpush2.bf16.msra.mxu0 %v785
    %964 = vmatprep.mubr.bf16.mxu0 %v470
    %965 = vmatmul.mubr.bf16.gmra.mxu0 %v469
    %v966 = vpop.f32.mrf.mxu0
    %v967 = vadd.f32 %v550, %v966
    %v968 = vpop.f32.mrf.mxu0
    %v969 = vadd.f32 %v554, %v968
    %v970 = vpop.f32.mrf.mxu0
    %v971 = vadd.f32 %v550, %v970
    %v972 = vpop.f32.mrf.mxu0
    %v973 = vadd.f32 %v554, %v972
    %974 = vmatprep.mubr.bf16.mxu0 %v472
    %975 = vmatmul.mubr.bf16.gmra.mxu0 %v471
    %v976 = vpop.f32.mrf.mxu0
    %v977 = vadd.f32 %v550, %v976
    %v978 = vpop.f32.mrf.mxu0
    %v979 = vadd.f32 %v554, %v978
    %v980 = vpop.f32.mrf.mxu0
    %v981 = vadd.f32 %v550, %v980
    %v982 = vpop.f32.mrf.mxu0
    %v983 = vadd.f32 %v554, %v982
    %984 = vdwg.mxu0
    %v985 = vmax.f32 %v914, %v918
    %v986 = vrot.slane %v985, 4
    %v987 = vmax.f32 %v985, %v986
    %v988 = vrot.slane %v987, 2
    %v989 = vmax.f32 %v987, %v988
    %v990 = vrot.slane %v989, 1
    %v991 = vmax.f32 %v989, %v990
    %v992 = vmax.f32 %v916, %v920
    %v993 = vrot.slane %v992, 4
    %v994 = vmax.f32 %v992, %v993
    %v995 = vrot.slane %v994, 2
    %v996 = vmax.f32 %v994, %v995
    %v997 = vrot.slane %v996, 1
    %v998 = vmax.f32 %v996, %v997
    %v999 = vmax.f32 %v967, %v971
    %v1000 = vrot.slane %v999, 4
    %v1001 = vmax.f32 %v999, %v1000
    %v1002 = vrot.slane %v1001, 2
    %v1003 = vmax.f32 %v1001, %v1002
    %v1004 = vrot.slane %v1003, 1
    %v1005 = vmax.f32 %v1003, %v1004
    %v1006 = vmax.f32 %v969, %v973
    %v1007 = vrot.slane %v1006, 4
    %v1008 = vmax.f32 %v1006, %v1007
    %v1009 = vrot.slane %v1008, 2
    %v1010 = vmax.f32 %v1008, %v1009
    %v1011 = vrot.slane %v1010, 1
    %v1012 = vmax.f32 %v1010, %v1011
    %v1013 = vmax.f32 %v924, %v928
    %v1014 = vrot.slane %v1013, 4
    %v1015 = vmax.f32 %v1013, %v1014
    %v1016 = vrot.slane %v1015, 2
    %v1017 = vmax.f32 %v1015, %v1016
    %v1018 = vrot.slane %v1017, 1
    %v1019 = vmax.f32 %v1017, %v1018
    %v1020 = vmax.f32 %v926, %v930
    %v1021 = vrot.slane %v1020, 4
    %v1022 = vmax.f32 %v1020, %v1021
    %v1023 = vrot.slane %v1022, 2
    %v1024 = vmax.f32 %v1022, %v1023
    %v1025 = vrot.slane %v1024, 1
    %v1026 = vmax.f32 %v1024, %v1025
    %v1027 = vmax.f32 %v977, %v981
    %v1028 = vrot.slane %v1027, 4
    %v1029 = vmax.f32 %v1027, %v1028
    %v1030 = vrot.slane %v1029, 2
    %v1031 = vmax.f32 %v1029, %v1030
    %v1032 = vrot.slane %v1031, 1
    %v1033 = vmax.f32 %v1031, %v1032
    %v1034 = vmax.f32 %v979, %v983
    %v1035 = vrot.slane %v1034, 4
    %v1036 = vmax.f32 %v1034, %v1035
    %v1037 = vrot.slane %v1036, 2
    %v1038 = vmax.f32 %v1036, %v1037
    %v1039 = vrot.slane %v1038, 1
    %v1040 = vmax.f32 %v1038, %v1039
    %v1041 = vpack.c.bf16 %v991, %v991
    %v1042 = vpack.c.bf16 %v998, %v998
    %v1043 = vpack.c.bf16 %v1005, %v1005
    %v1044 = vpack.c.bf16 %v1012, %v1012
    %v1045 = vpack.c.bf16 %v1019, %v1019
    %v1046 = vpack.c.bf16 %v1026, %v1026
    %v1047 = vpack.c.bf16 %v1033, %v1033
    %v1048 = vpack.c.bf16 %v1040, %v1040
    %v1049 = vld [vmem:[#allocation7] sm:$0xff]
    %v1050 = vld [vmem:[#allocation7 + $0x8] sm:$0xff]
    %v1051 = vld [vmem:[#allocation7 + $0x10] sm:$0xff]
    %v1052 = vld [vmem:[#allocation7 + $0x18] sm:$0xff]
    %v1053 = vld [vmem:[#allocation7 + $0x20] sm:$0xff]
    %v1054 = vld [vmem:[#allocation7 + $0x28] sm:$0xff]
    %v1055 = vld [vmem:[#allocation7 + $0x30] sm:$0xff]
    %v1056 = vld [vmem:[#allocation7 + $0x38] sm:$0xff]
    %v1057 = vld [vmem:[#allocation7 + $0x40] sm:$0xff]
    %v1058 = vld [vmem:[#allocation7 + $0x48] sm:$0xff]
    %v1059 = vld [vmem:[#allocation7 + $0x50] sm:$0xff]
    %v1060 = vld [vmem:[#allocation7 + $0x58] sm:$0xff]
    %v1061 = vld [vmem:[#allocation7 + $0x60] sm:$0xff]
    %v1062 = vld [vmem:[#allocation7 + $0x68] sm:$0xff]
    %v1063 = vld [vmem:[#allocation7 + $0x70] sm:$0xff]
    %v1064 = vld [vmem:[#allocation7 + $0x78] sm:$0xff]
    %v1065 = vld [vmem:[#allocation7 + $0x80] sm:$0xff]
    %v1066 = vld [vmem:[#allocation7 + $0x88] sm:$0xff]
    %v1067 = vld [vmem:[#allocation7 + $0x90] sm:$0xff]
    %v1068 = vld [vmem:[#allocation7 + $0x98] sm:$0xff]
    %v1069 = vld [vmem:[#allocation7 + $0xa0] sm:$0xff]
    %v1070 = vld [vmem:[#allocation7 + $0xa8] sm:$0xff]
    %v1071 = vld [vmem:[#allocation7 + $0xb0] sm:$0xff]
    %v1072 = vld [vmem:[#allocation7 + $0xb8] sm:$0xff]
    %v1073 = vld [vmem:[#allocation7 + $0xc0] sm:$0xff]
    %v1074 = vld [vmem:[#allocation7 + $0xc8] sm:$0xff]
    %v1075 = vld [vmem:[#allocation7 + $0xd0] sm:$0xff]
    %v1076 = vld [vmem:[#allocation7 + $0xd8] sm:$0xff]
    %v1077 = vld [vmem:[#allocation7 + $0xe0] sm:$0xff]
    %v1078 = vld [vmem:[#allocation7 + $0xe8] sm:$0xff]
    %v1079 = vld [vmem:[#allocation7 + $0xf0] sm:$0xff]
    %v1080 = vld [vmem:[#allocation7 + $0xf8] sm:$0xff]
    %v1081 = vld [vmem:[#allocation7 + $0x100] sm:$0xff]
    %v1082 = vld [vmem:[#allocation7 + $0x108] sm:$0xff]
    %v1083 = vld [vmem:[#allocation7 + $0x110] sm:$0xff]
    %v1084 = vld [vmem:[#allocation7 + $0x118] sm:$0xff]
    %v1085 = vld [vmem:[#allocation7 + $0x120] sm:$0xff]
    %v1086 = vld [vmem:[#allocation7 + $0x128] sm:$0xff]
    %v1087 = vld [vmem:[#allocation7 + $0x130] sm:$0xff]
    %v1088 = vld [vmem:[#allocation7 + $0x138] sm:$0xff]
    %v1089 = vld [vmem:[#allocation7 + $0x140] sm:$0xff]
    %v1090 = vld [vmem:[#allocation7 + $0x148] sm:$0xff]
    %v1091 = vld [vmem:[#allocation7 + $0x150] sm:$0xff]
    %v1092 = vld [vmem:[#allocation7 + $0x158] sm:$0xff]
    %v1093 = vld [vmem:[#allocation7 + $0x160] sm:$0xff]
    %v1094 = vld [vmem:[#allocation7 + $0x168] sm:$0xff]
    %v1095 = vld [vmem:[#allocation7 + $0x170] sm:$0xff]
    %v1096 = vld [vmem:[#allocation7 + $0x178] sm:$0xff]
    %v1097 = vld [vmem:[#allocation7 + $0x180] sm:$0xff]
    %v1098 = vld [vmem:[#allocation7 + $0x188] sm:$0xff]
    %v1099 = vld [vmem:[#allocation7 + $0x190] sm:$0xff]
    %v1100 = vld [vmem:[#allocation7 + $0x198] sm:$0xff]
    %v1101 = vld [vmem:[#allocation7 + $0x1a0] sm:$0xff]
    %v1102 = vld [vmem:[#allocation7 + $0x1a8] sm:$0xff]
    %v1103 = vld [vmem:[#allocation7 + $0x1b0] sm:$0xff]
    %v1104 = vld [vmem:[#allocation7 + $0x1b8] sm:$0xff]
    %v1105 = vld [vmem:[#allocation7 + $0x1c0] sm:$0xff]
    %v1106 = vld [vmem:[#allocation7 + $0x1c8] sm:$0xff]
    %v1107 = vld [vmem:[#allocation7 + $0x1d0] sm:$0xff]
    %v1108 = vld [vmem:[#allocation7 + $0x1d8] sm:$0xff]
    %v1109 = vld [vmem:[#allocation7 + $0x1e0] sm:$0xff]
    %v1110 = vld [vmem:[#allocation7 + $0x1e8] sm:$0xff]
    %v1111 = vld [vmem:[#allocation7 + $0x1f0] sm:$0xff]
    %v1112 = vld [vmem:[#allocation7 + $0x1f8] sm:$0xff]
    %v1113 = vld [vmem:[%s1 + $0x8] sm:$0x3]
    %v1115 = vlaneseq
    %v1116 = vshrl.u32 %v1115, 7
    %v1117 = vsub.s32 0, %v1116
    %v1118 = vrot.slane %v1113, %v1117
    %v1119 = vlaneseq
    %v1120 = vshrl.u32 %v1119, 7
    %v1121 = vsub.s32 1, %v1120
    %v1122 = vrot.slane %v1113, %v1121
    %v1133 = vunpack.c.l.b16 %v1041
    %v1134 = vunpack.c.l.b16 %v1042
    %v1135 = vunpack.c.l.b16 %v1043
    %v1136 = vunpack.c.l.b16 %v1044
    %v1137 = vunpack.c.l.b16 %v1045
    %v1138 = vunpack.c.l.b16 %v1046
    %v1139 = vunpack.c.l.b16 %v1047
    %v1140 = vunpack.c.l.b16 %v1048
    %vm1141 = vcmask 1041409
    %v1142 = vsel %vm1141, %v1137, %v1133
    %v1143 = vsel %vm1141, %v1138, %v1134
    %v1144 = vsel %vm1141, %v1139, %v1135
    %v1145 = vsel %vm1141, %v1140, %v1136
    %v1146 = vpack.c.b16 %v1142, %v1142
    %v1147 = vpack.c.b16 %v1143, %v1143
    %v1148 = vpack.c.b16 %v1144, %v1144
    %v1149 = vpack.c.b16 %v1145, %v1145
    %v1218 = vunpack.c.l.b16 %v1049
    %v1219 = vunpack.c.h.b16 %v1049
    %v1220 = vunpack.c.l.b16 %v1050
    %v1221 = vunpack.c.h.b16 %v1050
    %v1222 = vunpack.c.l.b16 %v1051
    %v1223 = vunpack.c.h.b16 %v1051
    %v1224 = vunpack.c.l.b16 %v1052
    %v1225 = vunpack.c.h.b16 %v1052
    %v1226 = vunpack.c.l.b16 %v1053
    %v1227 = vunpack.c.h.b16 %v1053
    %v1228 = vunpack.c.l.b16 %v1054
    %v1229 = vunpack.c.h.b16 %v1054
    %v1230 = vunpack.c.l.b16 %v1055
    %v1231 = vunpack.c.h.b16 %v1055
    %v1232 = vunpack.c.l.b16 %v1056
    %v1233 = vunpack.c.h.b16 %v1056
    %v1234 = vunpack.c.l.b16 %v1057
    %v1235 = vunpack.c.h.b16 %v1057
    %v1236 = vunpack.c.l.b16 %v1058
    %v1237 = vunpack.c.h.b16 %v1058
    %v1238 = vunpack.c.l.b16 %v1059
    %v1239 = vunpack.c.h.b16 %v1059
    %v1240 = vunpack.c.l.b16 %v1060
    %v1241 = vunpack.c.h.b16 %v1060
    %v1242 = vunpack.c.l.b16 %v1061
    %v1243 = vunpack.c.h.b16 %v1061
    %v1244 = vunpack.c.l.b16 %v1062
    %v1245 = vunpack.c.h.b16 %v1062
    %v1246 = vunpack.c.l.b16 %v1063
    %v1247 = vunpack.c.h.b16 %v1063
    %v1248 = vunpack.c.l.b16 %v1064
    %v1249 = vunpack.c.h.b16 %v1064
    %v1250 = vunpack.c.l.b16 %v1065
    %v1251 = vunpack.c.h.b16 %v1065
    %v1252 = vunpack.c.l.b16 %v1066
    %v1253 = vunpack.c.h.b16 %v1066
    %v1254 = vunpack.c.l.b16 %v1067
    %v1255 = vunpack.c.h.b16 %v1067
    %v1256 = vunpack.c.l.b16 %v1068
    %v1257 = vunpack.c.h.b16 %v1068
    %v1258 = vunpack.c.l.b16 %v1069
    %v1259 = vunpack.c.h.b16 %v1069
    %v1260 = vunpack.c.l.b16 %v1070
    %v1261 = vunpack.c.h.b16 %v1070
    %v1262 = vunpack.c.l.b16 %v1071
    %v1263 = vunpack.c.h.b16 %v1071
    %v1264 = vunpack.c.l.b16 %v1072
    %v1265 = vunpack.c.h.b16 %v1072
    %v1266 = vunpack.c.l.b16 %v1073
    %v1267 = vunpack.c.h.b16 %v1073
    %v1268 = vunpack.c.l.b16 %v1074
    %v1269 = vunpack.c.h.b16 %v1074
    %v1270 = vunpack.c.l.b16 %v1075
    %v1271 = vunpack.c.h.b16 %v1075
    %v1272 = vunpack.c.l.b16 %v1076
    %v1273 = vunpack.c.h.b16 %v1076
    %v1274 = vunpack.c.l.b16 %v1077
    %v1275 = vunpack.c.h.b16 %v1077
    %v1276 = vunpack.c.l.b16 %v1078
    %v1277 = vunpack.c.h.b16 %v1078
    %v1278 = vunpack.c.l.b16 %v1079
    %v1279 = vunpack.c.h.b16 %v1079
    %v1280 = vunpack.c.l.b16 %v1080
    %v1281 = vunpack.c.h.b16 %v1080
    %v1282 = vunpack.c.l.b16 %v1081
    %v1283 = vunpack.c.h.b16 %v1081
    %v1284 = vunpack.c.l.b16 %v1082
    %v1285 = vunpack.c.h.b16 %v1082
    %v1286 = vunpack.c.l.b16 %v1083
    %v1287 = vunpack.c.h.b16 %v1083
    %v1288 = vunpack.c.l.b16 %v1084
    %v1289 = vunpack.c.h.b16 %v1084
    %v1290 = vunpack.c.l.b16 %v1085
    %v1291 = vunpack.c.h.b16 %v1085
    %v1292 = vunpack.c.l.b16 %v1086
    %v1293 = vunpack.c.h.b16 %v1086
    %v1294 = vunpack.c.l.b16 %v1087
    %v1295 = vunpack.c.h.b16 %v1087
    %v1296 = vunpack.c.l.b16 %v1088
    %v1297 = vunpack.c.h.b16 %v1088
    %v1298 = vunpack.c.l.b16 %v1089
    %v1299 = vunpack.c.h.b16 %v1089
    %v1300 = vunpack.c.l.b16 %v1090
    %v1301 = vunpack.c.h.b16 %v1090
    %v1302 = vunpack.c.l.b16 %v1091
    %v1303 = vunpack.c.h.b16 %v1091
    %v1304 = vunpack.c.l.b16 %v1092
    %v1305 = vunpack.c.h.b16 %v1092
    %v1306 = vunpack.c.l.b16 %v1093
    %v1307 = vunpack.c.h.b16 %v1093
    %v1308 = vunpack.c.l.b16 %v1094
    %v1309 = vunpack.c.h.b16 %v1094
    %v1310 = vunpack.c.l.b16 %v1095
    %v1311 = vunpack.c.h.b16 %v1095
    %v1312 = vunpack.c.l.b16 %v1096
    %v1313 = vunpack.c.h.b16 %v1096
    %v1314 = vunpack.c.l.b16 %v1097
    %v1315 = vunpack.c.h.b16 %v1097
    %v1316 = vunpack.c.l.b16 %v1098
    %v1317 = vunpack.c.h.b16 %v1098
    %v1318 = vunpack.c.l.b16 %v1099
    %v1319 = vunpack.c.h.b16 %v1099
    %v1320 = vunpack.c.l.b16 %v1100
    %v1321 = vunpack.c.h.b16 %v1100
    %v1322 = vunpack.c.l.b16 %v1101
    %v1323 = vunpack.c.h.b16 %v1101
    %v1324 = vunpack.c.l.b16 %v1102
    %v1325 = vunpack.c.h.b16 %v1102
    %v1326 = vunpack.c.l.b16 %v1103
    %v1327 = vunpack.c.h.b16 %v1103
    %v1328 = vunpack.c.l.b16 %v1104
    %v1329 = vunpack.c.h.b16 %v1104
    %v1330 = vunpack.c.l.b16 %v1105
    %v1331 = vunpack.c.h.b16 %v1105
    %v1332 = vunpack.c.l.b16 %v1106
    %v1333 = vunpack.c.h.b16 %v1106
    %v1334 = vunpack.c.l.b16 %v1107
    %v1335 = vunpack.c.h.b16 %v1107
    %v1336 = vunpack.c.l.b16 %v1108
    %v1337 = vunpack.c.h.b16 %v1108
    %v1338 = vunpack.c.l.b16 %v1109
    %v1339 = vunpack.c.h.b16 %v1109
    %v1340 = vunpack.c.l.b16 %v1110
    %v1341 = vunpack.c.h.b16 %v1110
    %v1342 = vunpack.c.l.b16 %v1111
    %v1343 = vunpack.c.h.b16 %v1111
    %v1344 = vunpack.c.l.b16 %v1112
    %v1345 = vunpack.c.h.b16 %v1112
    %v1346 = vpack.c.b16 %v1220, %v1218
    %v1347 = vpack.c.b16 %v1221, %v1219
    %v1348 = vpack.c.b16 %v1224, %v1222
    %v1349 = vpack.c.b16 %v1225, %v1223
    %v1350 = vpack.c.b16 %v1228, %v1226
    %v1351 = vpack.c.b16 %v1229, %v1227
    %v1352 = vpack.c.b16 %v1232, %v1230
    %v1353 = vpack.c.b16 %v1233, %v1231
    %v1354 = vpack.c.b16 %v1236, %v1234
    %v1355 = vpack.c.b16 %v1237, %v1235
    %v1356 = vpack.c.b16 %v1240, %v1238
    %v1357 = vpack.c.b16 %v1241, %v1239
    %v1358 = vpack.c.b16 %v1244, %v1242
    %v1359 = vpack.c.b16 %v1245, %v1243
    %v1360 = vpack.c.b16 %v1248, %v1246
    %v1361 = vpack.c.b16 %v1249, %v1247
    %v1362 = vpack.c.b16 %v1252, %v1250
    %v1363 = vpack.c.b16 %v1253, %v1251
    %v1364 = vpack.c.b16 %v1256, %v1254
    %v1365 = vpack.c.b16 %v1257, %v1255
    %v1366 = vpack.c.b16 %v1260, %v1258
    %v1367 = vpack.c.b16 %v1261, %v1259
    %v1368 = vpack.c.b16 %v1264, %v1262
    %v1369 = vpack.c.b16 %v1265, %v1263
    %v1370 = vpack.c.b16 %v1268, %v1266
    %v1371 = vpack.c.b16 %v1269, %v1267
    %v1372 = vpack.c.b16 %v1272, %v1270
    %v1373 = vpack.c.b16 %v1273, %v1271
    %v1374 = vpack.c.b16 %v1276, %v1274
    %v1375 = vpack.c.b16 %v1277, %v1275
    %v1376 = vpack.c.b16 %v1280, %v1278
    %v1377 = vpack.c.b16 %v1281, %v1279
    %v1378 = vpack.c.b16 %v1284, %v1282
    %v1379 = vpack.c.b16 %v1285, %v1283
    %v1380 = vpack.c.b16 %v1288, %v1286
    %v1381 = vpack.c.b16 %v1289, %v1287
    %v1382 = vpack.c.b16 %v1292, %v1290
    %v1383 = vpack.c.b16 %v1293, %v1291
    %v1384 = vpack.c.b16 %v1296, %v1294
    %v1385 = vpack.c.b16 %v1297, %v1295
    %v1386 = vpack.c.b16 %v1300, %v1298
    %v1387 = vpack.c.b16 %v1301, %v1299
    %v1388 = vpack.c.b16 %v1304, %v1302
    %v1389 = vpack.c.b16 %v1305, %v1303
    %v1390 = vpack.c.b16 %v1308, %v1306
    %v1391 = vpack.c.b16 %v1309, %v1307
    %v1392 = vpack.c.b16 %v1312, %v1310
    %v1393 = vpack.c.b16 %v1313, %v1311
    %v1394 = vpack.c.b16 %v1316, %v1314
    %v1395 = vpack.c.b16 %v1317, %v1315
    %v1396 = vpack.c.b16 %v1320, %v1318
    %v1397 = vpack.c.b16 %v1321, %v1319
    %v1398 = vpack.c.b16 %v1324, %v1322
    %v1399 = vpack.c.b16 %v1325, %v1323
    %v1400 = vpack.c.b16 %v1328, %v1326
    %v1401 = vpack.c.b16 %v1329, %v1327
    %v1402 = vpack.c.b16 %v1332, %v1330
    %v1403 = vpack.c.b16 %v1333, %v1331
    %v1404 = vpack.c.b16 %v1336, %v1334
    %v1405 = vpack.c.b16 %v1337, %v1335
    %v1406 = vpack.c.b16 %v1340, %v1338
    %v1407 = vpack.c.b16 %v1341, %v1339
    %v1408 = vpack.c.b16 %v1344, %v1342
    %v1409 = vpack.c.b16 %v1345, %v1343
    %1474 = vmatprep.subr.bf16.mxu0 %v1361
    %1475 = vmatpush1.bf16.msra.mxu0 %v1360
    %1476 = vmatprep.subr.bf16.mxu0 %v1359
    %1477 = vmatpush1.bf16.msra.mxu0 %v1358
    %1478 = vmatprep.subr.bf16.mxu0 %v1357
    %1479 = vmatpush1.bf16.msra.mxu0 %v1356
    %1480 = vmatprep.subr.bf16.mxu0 %v1355
    %1481 = vmatpush1.bf16.msra.mxu0 %v1354
    %1482 = vmatprep.subr.bf16.mxu0 %v1353
    %1483 = vmatpush1.bf16.msra.mxu0 %v1352
    %1484 = vmatprep.subr.bf16.mxu0 %v1351
    %1485 = vmatpush1.bf16.msra.mxu0 %v1350
    %1486 = vmatprep.subr.bf16.mxu0 %v1349
    %1487 = vmatpush1.bf16.msra.mxu0 %v1348
    %1488 = vmatprep.subr.bf16.mxu0 %v1347
    %1489 = vmatpush1.bf16.msra.mxu0 %v1346
    %1490 = vmatprep.subr.bf16.mxu0 %v1377
    %1491 = vmatpush2.bf16.msra.mxu0 %v1376
    %1492 = vmatprep.subr.bf16.mxu0 %v1375
    %1493 = vmatpush2.bf16.msra.mxu0 %v1374
    %1494 = vmatprep.subr.bf16.mxu0 %v1373
    %1495 = vmatpush2.bf16.msra.mxu0 %v1372
    %1496 = vmatprep.subr.bf16.mxu0 %v1371
    %1497 = vmatpush2.bf16.msra.mxu0 %v1370
    %1498 = vmatprep.subr.bf16.mxu0 %v1369
    %1499 = vmatpush2.bf16.msra.mxu0 %v1368
    %1500 = vmatprep.subr.bf16.mxu0 %v1367
    %1501 = vmatpush2.bf16.msra.mxu0 %v1366
    %1502 = vmatprep.subr.bf16.mxu0 %v1365
    %1503 = vmatpush2.bf16.msra.mxu0 %v1364
    %1504 = vmatprep.subr.bf16.mxu0 %v1363
    %1505 = vmatpush2.bf16.msra.mxu0 %v1362
    %1506 = vmatprep.mubr.bf16.mxu0 %v1147
    %1507 = vmatmul.mubr.bf16.gmra.mxu0 %v1146
    %v1508 = vpop.f32.mrf.mxu0
    %v1509 = vadd.f32 %v1118, %v1508
    %v1510 = vpop.f32.mrf.mxu0
    %v1511 = vadd.f32 %v1122, %v1510
    %v1512 = vpop.f32.mrf.mxu0
    %v1513 = vpop.f32.mrf.mxu0
    %1514 = vdwg.mxu0
    %1515 = vmatprep.subr.bf16.mxu0 %v1393
    %1516 = vmatpush1.bf16.msra.mxu0 %v1392
    %1517 = vmatprep.subr.bf16.mxu0 %v1391
    %1518 = vmatpush1.bf16.msra.mxu0 %v1390
    %1519 = vmatprep.subr.bf16.mxu0 %v1389
    %1520 = vmatpush1.bf16.msra.mxu0 %v1388
    %1521 = vmatprep.subr.bf16.mxu0 %v1387
    %1522 = vmatpush1.bf16.msra.mxu0 %v1386
    %1523 = vmatprep.subr.bf16.mxu0 %v1385
    %1524 = vmatpush1.bf16.msra.mxu0 %v1384
    %1525 = vmatprep.subr.bf16.mxu0 %v1383
    %1526 = vmatpush1.bf16.msra.mxu0 %v1382
    %1527 = vmatprep.subr.bf16.mxu0 %v1381
    %1528 = vmatpush1.bf16.msra.mxu0 %v1380
    %1529 = vmatprep.subr.bf16.mxu0 %v1379
    %1530 = vmatpush1.bf16.msra.mxu0 %v1378
    %1531 = vmatprep.subr.bf16.mxu0 %v1409
    %1532 = vmatpush2.bf16.msra.mxu0 %v1408
    %1533 = vmatprep.subr.bf16.mxu0 %v1407
    %1534 = vmatpush2.bf16.msra.mxu0 %v1406
    %1535 = vmatprep.subr.bf16.mxu0 %v1405
    %1536 = vmatpush2.bf16.msra.mxu0 %v1404
    %1537 = vmatprep.subr.bf16.mxu0 %v1403
    %1538 = vmatpush2.bf16.msra.mxu0 %v1402
    %1539 = vmatprep.subr.bf16.mxu0 %v1401
    %1540 = vmatpush2.bf16.msra.mxu0 %v1400
    %1541 = vmatprep.subr.bf16.mxu0 %v1399
    %1542 = vmatpush2.bf16.msra.mxu0 %v1398
    %1543 = vmatprep.subr.bf16.mxu0 %v1397
    %1544 = vmatpush2.bf16.msra.mxu0 %v1396
    %1545 = vmatprep.subr.bf16.mxu0 %v1395
    %1546 = vmatpush2.bf16.msra.mxu0 %v1394
    %1547 = vmatprep.mubr.bf16.mxu0 %v1149
    %1548 = vmatmul.mubr.bf16.gmra.mxu0 %v1148
    %v1549 = vpop.f32.mrf.mxu0
    %v1550 = vadd.f32 %v1509, %v1549
    %v1551 = vpop.f32.mrf.mxu0
    %v1552 = vadd.f32 %v1511, %v1551
    %v1553 = vpop.f32.mrf.mxu0
    %v1554 = vpop.f32.mrf.mxu0
    %1555 = vdwg.mxu0
    %v1556 = vmax.f32 %v1550, 0.0
    %v1557 = vmax.f32 %v1552, 0.0
    %v1558 = vpack.c.bf16 %v1556, %v1556
    %v1559 = vpack.c.bf16 %v1557, %v1557
    %v1560 = vld [vmem:[#allocation5 + $0x10] sm:$0xf]
    %v1561 = vld [vmem:[#allocation5 + $0x24] sm:$0xf]
    %v1562 = vld [vmem:[#allocation5 + $0x38] sm:$0xf]
    %v1563 = vld [vmem:[#allocation5 + $0x4c] sm:$0xf]
    %v1564 = vld [vmem:[#allocation5 + $0x60] sm:$0xf]
    %v1565 = vld [vmem:[#allocation5 + $0x74] sm:$0xf]
    %v1566 = vld [vmem:[#allocation5 + $0x88] sm:$0xf]
    %v1567 = vld [vmem:[#allocation5 + $0x9c] sm:$0xf]
    %v1568 = vld [vmem:[#allocation5 + $0xb0] sm:$0xf]
    %v1569 = vld [vmem:[#allocation5 + $0xc4] sm:$0xf]
    %v1570 = vld [vmem:[#allocation5 + $0xd8] sm:$0xf]
    %v1571 = vld [vmem:[#allocation5 + $0xec] sm:$0xf]
    %v1572 = vld [vmem:[#allocation5 + $0x100] sm:$0xf]
    %v1573 = vld [vmem:[#allocation5 + $0x114] sm:$0xf]
    %v1574 = vld [vmem:[#allocation5 + $0x128] sm:$0xf]
    %v1575 = vld [vmem:[#allocation5 + $0x13c] sm:$0xf]
    %v1576 = vld [vmem:[#allocation5 + $0x150] sm:$0xf]
    %v1577 = vld [vmem:[#allocation5 + $0x164] sm:$0xf]
    %v1578 = vld [vmem:[#allocation5 + $0x178] sm:$0xf]
    %v1579 = vld [vmem:[#allocation5 + $0x18c] sm:$0xf]
    %v1580 = vld [vmem:[#allocation5 + $0x1a0] sm:$0xf]
    %v1581 = vld [vmem:[#allocation5 + $0x1b4] sm:$0xf]
    %v1582 = vld [vmem:[#allocation5 + $0x1c8] sm:$0xf]
    %v1583 = vld [vmem:[#allocation5 + $0x1dc] sm:$0xf]
    %v1584 = vld [vmem:[#allocation5 + $0x1f0] sm:$0xf]
    %v1585 = vld [vmem:[#allocation5 + $0x204] sm:$0xf]
    %v1586 = vld [vmem:[#allocation5 + $0x218] sm:$0xf]
    %v1587 = vld [vmem:[#allocation5 + $0x22c] sm:$0xf]
    %v1588 = vld [vmem:[#allocation5 + $0x240] sm:$0xf]
    %v1589 = vld [vmem:[#allocation5 + $0x254] sm:$0xf]
    %v1590 = vld [vmem:[#allocation5 + $0x268] sm:$0xf]
    %v1591 = vld [vmem:[#allocation5 + $0x27c] sm:$0xf]
    %v1592 = vld [vmem:[%s1 + $0xa] sm:$0x1]
    %v1594 = vlaneseq
    %v1595 = vshrl.u32 %v1594, 7
    %v1596 = vsub.s32 0, %v1595
    %v1597 = vrot.slane %v1592, %v1596
    %v1631 = vunpack.c.l.b16 %v1560
    %v1632 = vunpack.c.l.b16 %v1561
    %v1633 = vunpack.c.l.b16 %v1562
    %v1634 = vunpack.c.l.b16 %v1563
    %v1635 = vunpack.c.l.b16 %v1564
    %v1636 = vunpack.c.l.b16 %v1565
    %v1637 = vunpack.c.l.b16 %v1566
    %v1638 = vunpack.c.l.b16 %v1567
    %v1639 = vunpack.c.l.b16 %v1568
    %v1640 = vunpack.c.l.b16 %v1569
    %v1641 = vunpack.c.l.b16 %v1570
    %v1642 = vunpack.c.l.b16 %v1571
    %v1643 = vunpack.c.l.b16 %v1572
    %v1644 = vunpack.c.l.b16 %v1573
    %v1645 = vunpack.c.l.b16 %v1574
    %v1646 = vunpack.c.l.b16 %v1575
    %v1647 = vunpack.c.l.b16 %v1576
    %v1648 = vunpack.c.l.b16 %v1577
    %v1649 = vunpack.c.l.b16 %v1578
    %v1650 = vunpack.c.l.b16 %v1579
    %v1651 = vunpack.c.l.b16 %v1580
    %v1652 = vunpack.c.l.b16 %v1581
    %v1653 = vunpack.c.l.b16 %v1582
    %v1654 = vunpack.c.l.b16 %v1583
    %v1655 = vunpack.c.l.b16 %v1584
    %v1656 = vunpack.c.l.b16 %v1585
    %v1657 = vunpack.c.l.b16 %v1586
    %v1658 = vunpack.c.l.b16 %v1587
    %v1659 = vunpack.c.l.b16 %v1588
    %v1660 = vunpack.c.l.b16 %v1589
    %v1661 = vunpack.c.l.b16 %v1590
    %v1662 = vunpack.c.l.b16 %v1591
    %v1663 = vpack.c.b16 %v1632, %v1631
    %v1664 = vpack.c.b16 %v1634, %v1633
    %v1665 = vpack.c.b16 %v1636, %v1635
    %v1666 = vpack.c.b16 %v1638, %v1637
    %v1667 = vpack.c.b16 %v1640, %v1639
    %v1668 = vpack.c.b16 %v1642, %v1641
    %v1669 = vpack.c.b16 %v1644, %v1643
    %v1670 = vpack.c.b16 %v1646, %v1645
    %v1671 = vpack.c.b16 %v1648, %v1647
    %v1672 = vpack.c.b16 %v1650, %v1649
    %v1673 = vpack.c.b16 %v1652, %v1651
    %v1674 = vpack.c.b16 %v1654, %v1653
    %v1675 = vpack.c.b16 %v1656, %v1655
    %v1676 = vpack.c.b16 %v1658, %v1657
    %v1677 = vpack.c.b16 %v1660, %v1659
    %v1678 = vpack.c.b16 %v1662, %v1661
    %1695 = vmatprep.subr.bf16.mxu0 0
    %1696 = vmatpush1.bf16.msra.mxu0 %v1670
    %1697 = vmatprep.subr.bf16.mxu0 0
    %1698 = vmatpush1.bf16.msra.mxu0 %v1669
    %1699 = vmatprep.subr.bf16.mxu0 0
    %1700 = vmatpush1.bf16.msra.mxu0 %v1668
    %1701 = vmatprep.subr.bf16.mxu0 0
    %1702 = vmatpush1.bf16.msra.mxu0 %v1667
    %1703 = vmatprep.subr.bf16.mxu0 0
    %1704 = vmatpush1.bf16.msra.mxu0 %v1666
    %1705 = vmatprep.subr.bf16.mxu0 0
    %1706 = vmatpush1.bf16.msra.mxu0 %v1665
    %1707 = vmatprep.subr.bf16.mxu0 0
    %1708 = vmatpush1.bf16.msra.mxu0 %v1664
    %1709 = vmatprep.subr.bf16.mxu0 0
    %1710 = vmatpush1.bf16.msra.mxu0 %v1663
    %1711 = vmatprep.subr.bf16.mxu0 0
    %1712 = vmatpush2.bf16.msra.mxu0 %v1678
    %1713 = vmatprep.subr.bf16.mxu0 0
    %1714 = vmatpush2.bf16.msra.mxu0 %v1677
    %1715 = vmatprep.subr.bf16.mxu0 0
    %1716 = vmatpush2.bf16.msra.mxu0 %v1676
    %1717 = vmatprep.subr.bf16.mxu0 0
    %1718 = vmatpush2.bf16.msra.mxu0 %v1675
    %1719 = vmatprep.subr.bf16.mxu0 0
    %1720 = vmatpush2.bf16.msra.mxu0 %v1674
    %1721 = vmatprep.subr.bf16.mxu0 0
    %1722 = vmatpush2.bf16.msra.mxu0 %v1673
    %1723 = vmatprep.subr.bf16.mxu0 0
    %1724 = vmatpush2.bf16.msra.mxu0 %v1672
    %1725 = vmatprep.subr.bf16.mxu0 0
    %1726 = vmatpush2.bf16.msra.mxu0 %v1671
    %1727 = vmatprep.mubr.bf16.mxu0 %v1559
    %1728 = vmatmul.mubr.bf16.gmra.mxu0 %v1558
    %v1729 = vpop.f32.mrf.mxu0
    %v1730 = vadd.f32 %v1597, %v1729
    %v1731 = vpop.f32.mrf.mxu0
    %v1732 = vpop.f32.mrf.mxu0
    %v1733 = vpop.f32.mrf.mxu0
    %1734 = vdwg.mxu0
    %v1735 = vmax.f32 %v1730, 0.0
    %v1736 = vpack.c.bf16 %v1735, %v1735
    %v1737 = vld [vmem:[#allocation2 + $0xc] sm:$0xf]
    %v1738 = vld [vmem:[#allocation2 + $0x1c] sm:$0xf]
    %v1739 = vld [vmem:[#allocation2 + $0x2c] sm:$0xf]
    %v1740 = vld [vmem:[#allocation2 + $0x3c] sm:$0xf]
    %v1741 = vld [vmem:[#allocation2 + $0x4c] sm:$0xf]
    %v1742 = vld [vmem:[#allocation2 + $0x5c] sm:$0xf]
    %v1743 = vld [vmem:[#allocation2 + $0x6c] sm:$0xf]
    %v1744 = vld [vmem:[#allocation2 + $0x7c] sm:$0xf]
    %v1745 = vld [vmem:[#allocation2 + $0x8c] sm:$0xf]
    %v1746 = vld [vmem:[#allocation2 + $0x9c] sm:$0xf]
    %v1747 = vld [vmem:[#allocation2 + $0xac] sm:$0xf]
    %v1748 = vld [vmem:[#allocation2 + $0xbc] sm:$0xf]
    %v1749 = vld [vmem:[#allocation2 + $0xcc] sm:$0xf]
    %v1750 = vld [vmem:[#allocation2 + $0xdc] sm:$0xf]
    %v1751 = vld [vmem:[#allocation2 + $0xec] sm:$0xf]
    %v1752 = vld [vmem:[#allocation2 + $0xfc] sm:$0xf]
    %v1753 = vld [vmem:[%s1 + $0xb] sm:$0x1]
    %v1755 = vlaneseq
    %v1756 = vshrl.u32 %v1755, 7
    %v1757 = vsub.s32 0, %v1756
    %v1758 = vrot.slane %v1753, %v1757
    %v1776 = vunpack.c.l.b16 %v1737
    %v1777 = vunpack.c.l.b16 %v1738
    %v1778 = vunpack.c.l.b16 %v1739
    %v1779 = vunpack.c.l.b16 %v1740
    %v1780 = vunpack.c.l.b16 %v1741
    %v1781 = vunpack.c.l.b16 %v1742
    %v1782 = vunpack.c.l.b16 %v1743
    %v1783 = vunpack.c.l.b16 %v1744
    %v1784 = vunpack.c.l.b16 %v1745
    %v1785 = vunpack.c.l.b16 %v1746
    %v1786 = vunpack.c.l.b16 %v1747
    %v1787 = vunpack.c.l.b16 %v1748
    %v1788 = vunpack.c.l.b16 %v1749
    %v1789 = vunpack.c.l.b16 %v1750
    %v1790 = vunpack.c.l.b16 %v1751
    %v1791 = vunpack.c.l.b16 %v1752
    %v1792 = vpack.c.b16 %v1777, %v1776
    %v1793 = vpack.c.b16 %v1779, %v1778
    %v1794 = vpack.c.b16 %v1781, %v1780
    %v1795 = vpack.c.b16 %v1783, %v1782
    %v1796 = vpack.c.b16 %v1785, %v1784
    %v1797 = vpack.c.b16 %v1787, %v1786
    %v1798 = vpack.c.b16 %v1789, %v1788
    %v1799 = vpack.c.b16 %v1791, %v1790
    %1808 = vmatprep.subr.bf16.mxu0 0
    %1809 = vmatpush1.bf16.msra.mxu0 %v1799
    %1810 = vmatprep.subr.bf16.mxu0 0
    %1811 = vmatpush1.bf16.msra.mxu0 %v1798
    %1812 = vmatprep.subr.bf16.mxu0 0
    %1813 = vmatpush1.bf16.msra.mxu0 %v1797
    %1814 = vmatprep.subr.bf16.mxu0 0
    %1815 = vmatpush1.bf16.msra.mxu0 %v1796
    %1816 = vmatprep.subr.bf16.mxu0 0
    %1817 = vmatpush1.bf16.msra.mxu0 %v1795
    %1818 = vmatprep.subr.bf16.mxu0 0
    %1819 = vmatpush1.bf16.msra.mxu0 %v1794
    %1820 = vmatprep.subr.bf16.mxu0 0
    %1821 = vmatpush1.bf16.msra.mxu0 %v1793
    %1822 = vmatprep.subr.bf16.mxu0 0
    %1823 = vmatpush1.bf16.msra.mxu0 %v1792
    %1824 = vmatprep.subr.bf16.mxu0 0
    %1825 = vmatpush2.bf16.msra.mxu0 0
    %1826 = vmatprep.subr.bf16.mxu0 0
    %1827 = vmatpush2.bf16.msra.mxu0 0
    %1828 = vmatprep.subr.bf16.mxu0 0
    %1829 = vmatpush2.bf16.msra.mxu0 0
    %1830 = vmatprep.subr.bf16.mxu0 0
    %1831 = vmatpush2.bf16.msra.mxu0 0
    %1832 = vmatprep.subr.bf16.mxu0 0
    %1833 = vmatpush2.bf16.msra.mxu0 0
    %1834 = vmatprep.subr.bf16.mxu0 0
    %1835 = vmatpush2.bf16.msra.mxu0 0
    %1836 = vmatprep.subr.bf16.mxu0 0
    %1837 = vmatpush2.bf16.msra.mxu0 0
    %1838 = vmatprep.subr.bf16.mxu0 0
    %1839 = vmatpush2.bf16.msra.mxu0 0
    %1840 = vmatprep.mubr.bf16.mxu0 0
    %1841 = vmatmul.mubr.bf16.gmra.mxu0 %v1736
    %v1842 = vpop.f32.mrf.mxu0
    %v1843 = vadd.f32 %v1758, %v1842
    %v1844 = vpop.f32.mrf.mxu0
    %v1845 = vpop.f32.mrf.mxu0
    %v1846 = vpop.f32.mrf.mxu0
    %1847 = vdwg.mxu0
    %1848 = vst [vmem:[#allocation8] sm:$0x3] %v1843
    // Predicated region
    $region38: #{encoder_forward.1} parent=1 // pred_check
      _
    $region39: #{encoder_forward.1} parent=1 // pred_check_branch
      %1850 = sbr.rel (0) target = $region41
    $region40: #{encoder_forward.1} parent=1 // pred_region
      %s1852 = ssub.s32 32, 32
      %1853 = vsyncadd [#allocation4], %s1852
      %s1855 = sshll.u32 [#allocation8], 4
      %s1856 = int_to_ptr.vmem [resolvable:$true] %s1855
      %1858 = dma.vmem_to_hbm [thread:$0]  %s1856, 32, %s6, [#allocation4]
    $region41: #{encoder_forward.1} parent=1 // pred_fallthru
      _
    // Predicated region
    $region42: #{encoder_forward.1} parent=1 // pred_check
      _
    $region43: #{encoder_forward.1} parent=1 // pred_check_branch
      %1860 = sbr.rel (0) target = $region45
    $region44: #{encoder_forward.1} parent=1 // pred_region
      %1861 = dma.done [#allocation4], 32
    $region45: #{encoder_forward.1} parent=1 // pred_fallthru
      _
    %1862 = vsyncpa [#allocation3], 1
    %1863 = vsyncpa [#allocation6], 1
    %1864 = vsyncpa [#allocation4], 1

</llo_original>
